<compile_context>
chip_gen: v7x
topology: tpu7x:2x2x1
jax: 0.10.0
libtpu: 0.0.40
codegen_flags: <defaults>
</compile_context>

<pallas_src>
import numpy as np

import jax
import jax.numpy as jnp
from jax import lax
from jax.experimental import pallas as pl
from jax.experimental.pallas import tpu as pltpu

HID = 32      # hidden / latent width of every layer (padded where needed)
NW = 5        # number of linear layers (3 encoder + 2 predictor)
Y_DIM = 8     # true output_dims (padded to HID inside the packed layout)
GROUPS = 8    # lane-packing factor G: 8 fills the 256-wide v6e/v7x MXU (use 4 on v5e)


def _round_up(n, m):
    return ((n + m - 1) // m) * m


def encoder_kernel(domain_ref, x_ref, w_ref, b_ref, out_ref):
    G, tb, dd = domain_ref.shape
    xd = x_ref.shape[2]
    k_in = G * (dd + xd)            # valid rows of the first (block-diag) weight
    f32 = jnp.float32

    # Fused torch.cat([domain, x], 1) for all G lane-packed batch chunks:
    # chunk g occupies lanes [g*(dd+xd), (g+1)*(dd+xd)) of `inp`.
    pieces = []
    for g in range(G):
        pieces.append(domain_ref[g])
        pieces.append(x_ref[g])
    inp = jnp.concatenate(pieces, axis=1)          # [tb, G*(dd+xd)] f32

    if w_ref.dtype == jnp.float32:
        # Exact-f32 fallback: pin the multi-pass MXU precision explicitly.
        def dot(a, b):
            return jnp.dot(a, b, preferred_element_type=f32,
                           precision=lax.Precision.HIGHEST)
    else:
        # bf16 operands, f32 accumulation on the MXU (single pass per block).
        def dot(a, b):
            return jnp.dot(a.astype(w_ref.dtype), b, preferred_element_type=f32)

    def dense(h, layer, w):
        return dot(h, w) + b_ref[layer:layer + 1, :]   # bias add / ReLU in f32

    # fc_feats: Linear -> ReLU -> Linear -> ReLU -> Linear -> ReLU
    h = jnp.maximum(dense(inp, 0, w_ref[0][:k_in, :]), 0.0)
    h = jnp.maximum(dense(h, 1, w_ref[1]), 0.0)
    enc = jnp.maximum(dense(h, 2, w_ref[2]), 0.0)      # use_final_activation=True
    # fc_pred: Linear -> ReLU -> Linear
    p = jnp.maximum(dense(enc, 3, w_ref[3]), 0.0)
    y = dense(p, 4, w_ref[4])      # per-group lanes >= Y_DIM are exactly zero

    # 64-lane packed output per group: [ y (32, zero-padded) | enc (32) ].
    for g in range(G):
        out_ref[g] = jnp.concatenate(
            [y[:, g * HID:(g + 1) * HID], enc[:, g * HID:(g + 1) * HID]], axis=1)


def encoder_forward(x, domain, w_slab, b_slab, *, groups=GROUPS, block_rows=1024):
    """x: [B, input_dims], domain: [B, domain_dims] -> (y [B, 8], enc [B, 32])."""
    B, xd = x.shape
    dd = domain.shape[1]
    G = groups
    GH = G * HID
    assert dd + xd <= HID, "concatenated input must fit one 32-lane group"
    assert w_slab.shape == (NW, GH, GH) and b_slab.shape == (NW, GH), \
        "param slabs were packed with a different `groups`"

    # Rows per lane-packed chunk.  Pad only when B is not a multiple of G or a
    # chunk would have <8 rows; in the common case (B % G == 0) the
    # [B, d] -> [G, B//G, d] reshape is free and costs no extra HBM pass.
    BpG = max(pl.cdiv(B, G), 8)
    B_pad = G * BpG
    if B_pad != B:
        x = jnp.pad(x, ((0, B_pad - B), (0, 0)))
        domain = jnp.pad(domain, ((0, B_pad - B), (0, 0)))
    x3 = x.reshape(G, BpG, xd)
    domain3 = domain.reshape(G, BpG, dd)

    # Batch tile in packed rows (each row carries G batch rows).  Aim for >=2
    # grid steps so v7x can spread tiles over both TensorCores; a partial tail
    # tile is masked by Pallas (don't-care reads, masked writes, sliced off).
    if BpG <= 8:
        TB = BpG
    else:
        TB = min(block_rows, _round_up(pl.cdiv(BpG, 2), 8))
        TB = max(8, (TB // 8) * 8)
    grid = (pl.cdiv(BpG, TB),)

    cost = pl.CostEstimate(
        flops=2 * B_pad * ((dd + xd) * HID + 3 * HID * HID + HID * Y_DIM),
        transcendentals=0,
        bytes_accessed=4 * (B_pad * (dd + xd) + B_pad * 2 * HID + int(b_slab.size))
        + int(w_slab.size) * w_slab.dtype.itemsize,
    )

    out = pl.pallas_call(
        encoder_kernel,
        out_shape=jax.ShapeDtypeStruct((G, BpG, 2 * HID), jnp.float32),
        grid=grid,
        in_specs=[
            pl.BlockSpec((G, TB, dd), lambda i: (0, i, 0)),    # domain (tiled)
            pl.BlockSpec((G, TB, xd), lambda i: (0, i, 0)),    # x (tiled)
            pl.BlockSpec((NW, GH, GH), lambda i: (0, 0, 0)),   # weights (resident)
            pl.BlockSpec((NW, GH), lambda i: (0, 0)),          # biases (resident)
        ],
        out_specs=pl.BlockSpec((G, TB, 2 * HID), lambda i: (0, i, 0)),
        compiler_params=pltpu.CompilerParams(
            dimension_semantics=("parallel",),
            vmem_limit_bytes=32 * 1024 * 1024),
        cost_estimate=cost,
    )(domain3, x3, w_slab, b_slab)

    # out[g, r] is batch row g*BpG + r, so a (free) reshape restores batch order;
    # any pad rows fall off the [:B] slice.
    out_flat = out.reshape(G * BpG, 2 * HID)
    y = out_flat[:B, :Y_DIM]
    enc = out_flat[:B, HID:2 * HID]
    return y, enc


# ----------------------------- parameters ----------------------------------

def init_linear(key, in_dim, out_dim):
    """PyTorch nn.Linear default init, stored transposed as [in, out]."""
    k = 1.0 / jnp.sqrt(jnp.float32(in_dim))
    kw, kb = jax.random.split(key)
    w = jax.random.uniform(kw, (in_dim, out_dim), jnp.float32, -k, k)
    b = jax.random.uniform(kb, (out_dim,), jnp.float32, -k, k)
    return w, b


def make_params(key, *, domain_dims, input_dims, enc_hidden, latent,
                pred_hidden, out_dims):
    keys = jax.random.split(key, 5)
    p = {}
    p["w1"], p["b1"] = init_linear(keys[0], domain_dims + input_dims, enc_hidden)
    p["w2"], p["b2"] = init_linear(keys[1], enc_hidden, enc_hidden)
    p["w3"], p["b3"] = init_linear(keys[2], enc_hidden, latent)
    p["wp1"], p["bp1"] = init_linear(keys[3], latent, pred_hidden)
    p["wp2"], p["bp2"] = init_linear(keys[4], pred_hidden, out_dims)
    return p


def pack_params(p, *, groups=GROUPS, dtype=jnp.bfloat16):
    """Pack the 5 layers into G-way block-diagonal slabs.

    w_slab [5, G*32, G*32] (bf16 by default): layer l's block for group g sits at
      rows [g*din_l, g*din_l+din_l) (din_0 = domain+input dims, else 32) and
      cols [g*32, g*32+dout_l); everything else is zero.
    b_slab [5, G*32] float32: each layer's bias zero-padded to 32, tiled G times.
    """
    G, GH = groups, groups * HID
    names = [("w1", "b1"), ("w2", "b2"), ("w3", "b3"), ("wp1", "bp1"), ("wp2", "bp2")]
    w_slab = np.zeros((NW, GH, GH), np.float32)
    b_slab = np.zeros((NW, GH), np.float32)
    for l, (wn, bn) in enumerate(names):
        w = np.asarray(p[wn], np.float32)
        b = np.asarray(p[bn], np.float32).reshape(-1)
        din, dout = w.shape
        rstep = din if l == 0 else HID
        for g in range(G):
            w_slab[l, g * rstep:g * rstep + din, g * HID:g * HID + dout] = w
            b_slab[l, g * HID:g * HID + dout] = b
    return jnp.asarray(w_slab, dtype), jnp.asarray(b_slab, jnp.float32)


def encoder_ref(x, domain, p):
    """Pure-JAX reference (f32) for correctness check."""
    h = jnp.concatenate([domain, x], axis=1)
    h = jnp.maximum(h @ p["w1"] + p["b1"], 0.0)
    h = jnp.maximum(h @ p["w2"] + p["b2"], 0.0)
    enc = jnp.maximum(h @ p["w3"] + p["b3"], 0.0)
    q = jnp.maximum(enc @ p["wp1"] + p["bp1"], 0.0)
    y = q @ p["wp2"] + p["bp2"]
    return y, enc


if __name__ == "__main__":
    domain_dims, input_dims = 4, 12
    enc_hidden, latent, pred_hidden, out_dims = 32, 32, 32, 8

    key = jax.random.PRNGKey(0)
    kp, kx1, kd1, kx2, kd2 = jax.random.split(key, 5)
    params = make_params(kp, domain_dims=domain_dims, input_dims=input_dims,
                         enc_hidden=enc_hidden, latent=latent,
                         pred_hidden=pred_hidden, out_dims=out_dims)
    w_slab, b_slab = pack_params(params)          # bf16 block-diagonal slabs

    # Small shape (B=8) plus a multi-tile / partial-tail shape (B=200).
    for B, kx, kd in ((8, kx1, kd1), (200, kx2, kd2)):
        x = jax.random.normal(kx, (B, input_dims), jnp.float32)
        domain = jax.random.normal(kd, (B, domain_dims), jnp.float32)

        y, enc = jax.block_until_ready(encoder_forward(x, domain, w_slab, b_slab))
        y_ref, enc_ref_ = encoder_ref(x, domain, params)

        assert y.shape == (B, out_dims) and enc.shape == (B, latent)
        # bf16 matmul operands (f32 accumulation) => ~1e-2-level agreement.
        assert jnp.allclose(y, y_ref, atol=1e-1, rtol=1e-1), "y mismatch"
        assert jnp.allclose(enc, enc_ref_, atol=1e-1, rtol=1e-1), "enc mismatch"

    print("KERNEL_OK")
</pallas_src>

<mosaic_0001>
module attributes {stable_mosaic.version = 11 : i64} {
  func.func @encoder_kernel(%arg0: i32, %arg1: memref<8x8x4xf32, #tpu.memory_space<vmem>>, %arg2: memref<8x8x12xf32, #tpu.memory_space<vmem>>, %arg3: memref<5x256x256xbf16, #tpu.memory_space<vmem>>, %arg4: memref<5x256xf32, #tpu.memory_space<vmem>>, %arg5: memref<8x8x64xf32, #tpu.memory_space<vmem>>) attributes {dimension_semantics = [#tpu.dimension_semantics<parallel>], iteration_bounds = array<i64: 1>, scalar_prefetch = 0 : i64, scratch_operands = 0 : i64, tpu.core_type = #tpu.core_type<tc>, window_params = [{transform_indices = @transform_0, window_bounds = array<i64: 8, 8, 4>}, {transform_indices = @transform_1, window_bounds = array<i64: 8, 8, 12>}, {pipeline_mode = #tpu.pipeline_mode<synchronous>, transform_indices = @transform_2, window_bounds = array<i64: 5, 256, 256>}, {pipeline_mode = #tpu.pipeline_mode<synchronous>, transform_indices = @transform_3, window_bounds = array<i64: 5, 256>}, {transform_indices = @transform_4, window_bounds = array<i64: 8, 8, 64>}]} {
    %c0 = arith.constant 0 : index
    %c0_0 = arith.constant 0 : index
    %c0_1 = arith.constant 0 : index
    %0 = vector.load %arg1[%c0, %c0_0, %c0_1] : memref<8x8x4xf32, #tpu.memory_space<vmem>>, vector<1x8x4xf32>
    %1 = vector.shape_cast %0 : vector<1x8x4xf32> to vector<8x4xf32>
    %c0_2 = arith.constant 0 : index
    %c0_3 = arith.constant 0 : index
    %c0_4 = arith.constant 0 : index
    %2 = vector.load %arg2[%c0_2, %c0_3, %c0_4] : memref<8x8x12xf32, #tpu.memory_space<vmem>>, vector<1x8x12xf32>
    %3 = vector.shape_cast %2 : vector<1x8x12xf32> to vector<8x12xf32>
    %c1 = arith.constant 1 : index
    %c0_5 = arith.constant 0 : index
    %c0_6 = arith.constant 0 : index
    %4 = vector.load %arg1[%c1, %c0_5, %c0_6] : memref<8x8x4xf32, #tpu.memory_space<vmem>>, vector<1x8x4xf32>
    %5 = vector.shape_cast %4 : vector<1x8x4xf32> to vector<8x4xf32>
    %c1_7 = arith.constant 1 : index
    %c0_8 = arith.constant 0 : index
    %c0_9 = arith.constant 0 : index
    %6 = vector.load %arg2[%c1_7, %c0_8, %c0_9] : memref<8x8x12xf32, #tpu.memory_space<vmem>>, vector<1x8x12xf32>
    %7 = vector.shape_cast %6 : vector<1x8x12xf32> to vector<8x12xf32>
    %c2 = arith.constant 2 : index
    %c0_10 = arith.constant 0 : index
    %c0_11 = arith.constant 0 : index
    %8 = vector.load %arg1[%c2, %c0_10, %c0_11] : memref<8x8x4xf32, #tpu.memory_space<vmem>>, vector<1x8x4xf32>
    %9 = vector.shape_cast %8 : vector<1x8x4xf32> to vector<8x4xf32>
    %c2_12 = arith.constant 2 : index
    %c0_13 = arith.constant 0 : index
    %c0_14 = arith.constant 0 : index
    %10 = vector.load %arg2[%c2_12, %c0_13, %c0_14] : memref<8x8x12xf32, #tpu.memory_space<vmem>>, vector<1x8x12xf32>
    %11 = vector.shape_cast %10 : vector<1x8x12xf32> to vector<8x12xf32>
    %c3 = arith.constant 3 : index
    %c0_15 = arith.constant 0 : index
    %c0_16 = arith.constant 0 : index
    %12 = vector.load %arg1[%c3, %c0_15, %c0_16] : memref<8x8x4xf32, #tpu.memory_space<vmem>>, vector<1x8x4xf32>
    %13 = vector.shape_cast %12 : vector<1x8x4xf32> to vector<8x4xf32>
    %c3_17 = arith.constant 3 : index
    %c0_18 = arith.constant 0 : index
    %c0_19 = arith.constant 0 : index
    %14 = vector.load %arg2[%c3_17, %c0_18, %c0_19] : memref<8x8x12xf32, #tpu.memory_space<vmem>>, vector<1x8x12xf32>
    %15 = vector.shape_cast %14 : vector<1x8x12xf32> to vector<8x12xf32>
    %c4 = arith.constant 4 : index
    %c0_20 = arith.constant 0 : index
    %c0_21 = arith.constant 0 : index
    %16 = vector.load %arg1[%c4, %c0_20, %c0_21] : memref<8x8x4xf32, #tpu.memory_space<vmem>>, vector<1x8x4xf32>
    %17 = vector.shape_cast %16 : vector<1x8x4xf32> to vector<8x4xf32>
    %c4_22 = arith.constant 4 : index
    %c0_23 = arith.constant 0 : index
    %c0_24 = arith.constant 0 : index
    %18 = vector.load %arg2[%c4_22, %c0_23, %c0_24] : memref<8x8x12xf32, #tpu.memory_space<vmem>>, vector<1x8x12xf32>
    %19 = vector.shape_cast %18 : vector<1x8x12xf32> to vector<8x12xf32>
    %c5 = arith.constant 5 : index
    %c0_25 = arith.constant 0 : index
    %c0_26 = arith.constant 0 : index
    %20 = vector.load %arg1[%c5, %c0_25, %c0_26] : memref<8x8x4xf32, #tpu.memory_space<vmem>>, vector<1x8x4xf32>
    %21 = vector.shape_cast %20 : vector<1x8x4xf32> to vector<8x4xf32>
    %c5_27 = arith.constant 5 : index
    %c0_28 = arith.constant 0 : index
    %c0_29 = arith.constant 0 : index
    %22 = vector.load %arg2[%c5_27, %c0_28, %c0_29] : memref<8x8x12xf32, #tpu.memory_space<vmem>>, vector<1x8x12xf32>
    %23 = vector.shape_cast %22 : vector<1x8x12xf32> to vector<8x12xf32>
    %c6 = arith.constant 6 : index
    %c0_30 = arith.constant 0 : index
    %c0_31 = arith.constant 0 : index
    %24 = vector.load %arg1[%c6, %c0_30, %c0_31] : memref<8x8x4xf32, #tpu.memory_space<vmem>>, vector<1x8x4xf32>
    %25 = vector.shape_cast %24 : vector<1x8x4xf32> to vector<8x4xf32>
    %c6_32 = arith.constant 6 : index
    %c0_33 = arith.constant 0 : index
    %c0_34 = arith.constant 0 : index
    %26 = vector.load %arg2[%c6_32, %c0_33, %c0_34] : memref<8x8x12xf32, #tpu.memory_space<vmem>>, vector<1x8x12xf32>
    %27 = vector.shape_cast %26 : vector<1x8x12xf32> to vector<8x12xf32>
    %c7 = arith.constant 7 : index
    %c0_35 = arith.constant 0 : index
    %c0_36 = arith.constant 0 : index
    %28 = vector.load %arg1[%c7, %c0_35, %c0_36] : memref<8x8x4xf32, #tpu.memory_space<vmem>>, vector<1x8x4xf32>
    %29 = vector.shape_cast %28 : vector<1x8x4xf32> to vector<8x4xf32>
    %c7_37 = arith.constant 7 : index
    %c0_38 = arith.constant 0 : index
    %c0_39 = arith.constant 0 : index
    %30 = vector.load %arg2[%c7_37, %c0_38, %c0_39] : memref<8x8x12xf32, #tpu.memory_space<vmem>>, vector<1x8x12xf32>
    %31 = vector.shape_cast %30 : vector<1x8x12xf32> to vector<8x12xf32>
    %32 = tpu.concatenate %1, %3, %5, %7, %9, %11, %13, %15, %17, %19, %21, %23, %25, %27, %29, %31 in 1 : vector<8x4xf32>, vector<8x12xf32>, vector<8x4xf32>, vector<8x12xf32>, vector<8x4xf32>, vector<8x12xf32>, vector<8x4xf32>, vector<8x12xf32>, vector<8x4xf32>, vector<8x12xf32>, vector<8x4xf32>, vector<8x12xf32>, vector<8x4xf32>, vector<8x12xf32>, vector<8x4xf32>, vector<8x12xf32> -> vector<8x128xf32>
    %c0_40 = arith.constant 0 : index
    %c0_41 = arith.constant 0 : index
    %c0_42 = arith.constant 0 : index
    %33 = vector.load %arg3[%c0_40, %c0_41, %c0_42] : memref<5x256x256xbf16, #tpu.memory_space<vmem>>, vector<1x256x256xbf16>
    %34 = vector.shape_cast %33 : vector<1x256x256xbf16> to vector<256x256xbf16>
    %35 = vector.extract_strided_slice %34 {offsets = [0, 0], sizes = [128, 256], strides = [1, 1]} : vector<256x256xbf16> to vector<128x256xbf16>
    %36 = arith.truncf %32 : vector<8x128xf32> to vector<8x128xbf16>
    %cst = arith.constant dense<0.000000e+00> : vector<8x256xf32>
    %37 = tpu.matmul %36, %35, %cst {dimension_numbers = #tpu.dot_dimension_numbers<[1], [0], [0], [1], [0, 0, 1, 1], [], []>} : vector<8x128xbf16>, vector<128x256xbf16>, vector<8x256xf32> -> vector<8x256xf32>
    %c0_43 = arith.constant 0 : index
    %c0_44 = arith.constant 0 : index
    %38 = vector.load %arg4[%c0_43, %c0_44] : memref<5x256xf32, #tpu.memory_space<vmem>>, vector<1x256xf32>
    %39 = vector.broadcast %38 : vector<1x256xf32> to vector<8x256xf32>
    %40 = arith.addf %37, %39 : vector<8x256xf32>
    %cst_45 = arith.constant 0.000000e+00 : f32
    %41 = vector.broadcast %cst_45 : f32 to vector<8x256xf32>
    %42 = arith.maximumf %40, %41 : vector<8x256xf32>
    %c1_46 = arith.constant 1 : index
    %c0_47 = arith.constant 0 : index
    %c0_48 = arith.constant 0 : index
    %43 = vector.load %arg3[%c1_46, %c0_47, %c0_48] : memref<5x256x256xbf16, #tpu.memory_space<vmem>>, vector<1x256x256xbf16>
    %44 = vector.shape_cast %43 : vector<1x256x256xbf16> to vector<256x256xbf16>
    %45 = arith.truncf %42 : vector<8x256xf32> to vector<8x256xbf16>
    %cst_49 = arith.constant dense<0.000000e+00> : vector<8x256xf32>
    %46 = tpu.matmul %45, %44, %cst_49 {dimension_numbers = #tpu.dot_dimension_numbers<[1], [0], [0], [1], [0, 0, 1, 1], [], []>} : vector<8x256xbf16>, vector<256x256xbf16>, vector<8x256xf32> -> vector<8x256xf32>
    %c1_50 = arith.constant 1 : index
    %c0_51 = arith.constant 0 : index
    %47 = vector.load %arg4[%c1_50, %c0_51] : memref<5x256xf32, #tpu.memory_space<vmem>>, vector<1x256xf32>
    %48 = vector.broadcast %47 : vector<1x256xf32> to vector<8x256xf32>
    %49 = arith.addf %46, %48 : vector<8x256xf32>
    %cst_52 = arith.constant 0.000000e+00 : f32
    %50 = vector.broadcast %cst_52 : f32 to vector<8x256xf32>
    %51 = arith.maximumf %49, %50 : vector<8x256xf32>
    %c2_53 = arith.constant 2 : index
    %c0_54 = arith.constant 0 : index
    %c0_55 = arith.constant 0 : index
    %52 = vector.load %arg3[%c2_53, %c0_54, %c0_55] : memref<5x256x256xbf16, #tpu.memory_space<vmem>>, vector<1x256x256xbf16>
    %53 = vector.shape_cast %52 : vector<1x256x256xbf16> to vector<256x256xbf16>
    %54 = arith.truncf %51 : vector<8x256xf32> to vector<8x256xbf16>
    %cst_56 = arith.constant dense<0.000000e+00> : vector<8x256xf32>
    %55 = tpu.matmul %54, %53, %cst_56 {dimension_numbers = #tpu.dot_dimension_numbers<[1], [0], [0], [1], [0, 0, 1, 1], [], []>} : vector<8x256xbf16>, vector<256x256xbf16>, vector<8x256xf32> -> vector<8x256xf32>
    %c2_57 = arith.constant 2 : index
    %c0_58 = arith.constant 0 : index
    %56 = vector.load %arg4[%c2_57, %c0_58] : memref<5x256xf32, #tpu.memory_space<vmem>>, vector<1x256xf32>
    %57 = vector.broadcast %56 : vector<1x256xf32> to vector<8x256xf32>
    %58 = arith.addf %55, %57 : vector<8x256xf32>
    %cst_59 = arith.constant 0.000000e+00 : f32
    %59 = vector.broadcast %cst_59 : f32 to vector<8x256xf32>
    %60 = arith.maximumf %58, %59 : vector<8x256xf32>
    %c3_60 = arith.constant 3 : index
    %c0_61 = arith.constant 0 : index
    %c0_62 = arith.constant 0 : index
    %61 = vector.load %arg3[%c3_60, %c0_61, %c0_62] : memref<5x256x256xbf16, #tpu.memory_space<vmem>>, vector<1x256x256xbf16>
    %62 = vector.shape_cast %61 : vector<1x256x256xbf16> to vector<256x256xbf16>
    %63 = arith.truncf %60 : vector<8x256xf32> to vector<8x256xbf16>
    %cst_63 = arith.constant dense<0.000000e+00> : vector<8x256xf32>
    %64 = tpu.matmul %63, %62, %cst_63 {dimension_numbers = #tpu.dot_dimension_numbers<[1], [0], [0], [1], [0, 0, 1, 1], [], []>} : vector<8x256xbf16>, vector<256x256xbf16>, vector<8x256xf32> -> vector<8x256xf32>
    %c3_64 = arith.constant 3 : index
    %c0_65 = arith.constant 0 : index
    %65 = vector.load %arg4[%c3_64, %c0_65] : memref<5x256xf32, #tpu.memory_space<vmem>>, vector<1x256xf32>
    %66 = vector.broadcast %65 : vector<1x256xf32> to vector<8x256xf32>
    %67 = arith.addf %64, %66 : vector<8x256xf32>
    %cst_66 = arith.constant 0.000000e+00 : f32
    %68 = vector.broadcast %cst_66 : f32 to vector<8x256xf32>
    %69 = arith.maximumf %67, %68 : vector<8x256xf32>
    %c4_67 = arith.constant 4 : index
    %c0_68 = arith.constant 0 : index
    %c0_69 = arith.constant 0 : index
    %70 = vector.load %arg3[%c4_67, %c0_68, %c0_69] : memref<5x256x256xbf16, #tpu.memory_space<vmem>>, vector<1x256x256xbf16>
    %71 = vector.shape_cast %70 : vector<1x256x256xbf16> to vector<256x256xbf16>
    %72 = arith.truncf %69 : vector<8x256xf32> to vector<8x256xbf16>
    %cst_70 = arith.constant dense<0.000000e+00> : vector<8x256xf32>
    %73 = tpu.matmul %72, %71, %cst_70 {dimension_numbers = #tpu.dot_dimension_numbers<[1], [0], [0], [1], [0, 0, 1, 1], [], []>} : vector<8x256xbf16>, vector<256x256xbf16>, vector<8x256xf32> -> vector<8x256xf32>
    %c4_71 = arith.constant 4 : index
    %c0_72 = arith.constant 0 : index
    %74 = vector.load %arg4[%c4_71, %c0_72] : memref<5x256xf32, #tpu.memory_space<vmem>>, vector<1x256xf32>
    %75 = vector.broadcast %74 : vector<1x256xf32> to vector<8x256xf32>
    %76 = arith.addf %73, %75 : vector<8x256xf32>
    %77 = vector.extract_strided_slice %76 {offsets = [0, 0], sizes = [8, 32], strides = [1, 1]} : vector<8x256xf32> to vector<8x32xf32>
    %78 = vector.extract_strided_slice %60 {offsets = [0, 0], sizes = [8, 32], strides = [1, 1]} : vector<8x256xf32> to vector<8x32xf32>
    %79 = tpu.concatenate %77, %78 in 1 : vector<8x32xf32>, vector<8x32xf32> -> vector<8x64xf32>
    %c0_73 = arith.constant 0 : index
    %c0_74 = arith.constant 0 : index
    %c0_75 = arith.constant 0 : index
    %80 = vector.load %arg5[%c0_73, %c0_74, %c0_75] : memref<8x8x64xf32, #tpu.memory_space<vmem>>, vector<1x8x64xf32>
    %81 = vector.shape_cast %80 : vector<1x8x64xf32> to vector<8x64xf32>
    %82 = vector.shape_cast %79 : vector<8x64xf32> to vector<1x8x64xf32>
    tpu.vector_store %arg5[%c0_73, %c0_74, %c0_75], %82 {strides = array<i32>} : memref<8x8x64xf32, #tpu.memory_space<vmem>>, vector<1x8x64xf32>,
    %83 = vector.extract_strided_slice %76 {offsets = [0, 32], sizes = [8, 32], strides = [1, 1]} : vector<8x256xf32> to vector<8x32xf32>
    %84 = vector.extract_strided_slice %60 {offsets = [0, 32], sizes = [8, 32], strides = [1, 1]} : vector<8x256xf32> to vector<8x32xf32>
    %85 = tpu.concatenate %83, %84 in 1 : vector<8x32xf32>, vector<8x32xf32> -> vector<8x64xf32>
    %c1_76 = arith.constant 1 : index
    %c0_77 = arith.constant 0 : index
    %c0_78 = arith.constant 0 : index
    %86 = vector.load %arg5[%c1_76, %c0_77, %c0_78] : memref<8x8x64xf32, #tpu.memory_space<vmem>>, vector<1x8x64xf32>
    %87 = vector.shape_cast %86 : vector<1x8x64xf32> to vector<8x64xf32>
    %88 = vector.shape_cast %85 : vector<8x64xf32> to vector<1x8x64xf32>
    tpu.vector_store %arg5[%c1_76, %c0_77, %c0_78], %88 {strides = array<i32>} : memref<8x8x64xf32, #tpu.memory_space<vmem>>, vector<1x8x64xf32>,
    %89 = vector.extract_strided_slice %76 {offsets = [0, 64], sizes = [8, 32], strides = [1, 1]} : vector<8x256xf32> to vector<8x32xf32>
    %90 = vector.extract_strided_slice %60 {offsets = [0, 64], sizes = [8, 32], strides = [1, 1]} : vector<8x256xf32> to vector<8x32xf32>
    %91 = tpu.concatenate %89, %90 in 1 : vector<8x32xf32>, vector<8x32xf32> -> vector<8x64xf32>
    %c2_79 = arith.constant 2 : index
    %c0_80 = arith.constant 0 : index
    %c0_81 = arith.constant 0 : index
    %92 = vector.load %arg5[%c2_79, %c0_80, %c0_81] : memref<8x8x64xf32, #tpu.memory_space<vmem>>, vector<1x8x64xf32>
    %93 = vector.shape_cast %92 : vector<1x8x64xf32> to vector<8x64xf32>
    %94 = vector.shape_cast %91 : vector<8x64xf32> to vector<1x8x64xf32>
    tpu.vector_store %arg5[%c2_79, %c0_80, %c0_81], %94 {strides = array<i32>} : memref<8x8x64xf32, #tpu.memory_space<vmem>>, vector<1x8x64xf32>,
    %95 = vector.extract_strided_slice %76 {offsets = [0, 96], sizes = [8, 32], strides = [1, 1]} : vector<8x256xf32> to vector<8x32xf32>
    %96 = vector.extract_strided_slice %60 {offsets = [0, 96], sizes = [8, 32], strides = [1, 1]} : vector<8x256xf32> to vector<8x32xf32>
    %97 = tpu.concatenate %95, %96 in 1 : vector<8x32xf32>, vector<8x32xf32> -> vector<8x64xf32>
    %c3_82 = arith.constant 3 : index
    %c0_83 = arith.constant 0 : index
    %c0_84 = arith.constant 0 : index
    %98 = vector.load %arg5[%c3_82, %c0_83, %c0_84] : memref<8x8x64xf32, #tpu.memory_space<vmem>>, vector<1x8x64xf32>
    %99 = vector.shape_cast %98 : vector<1x8x64xf32> to vector<8x64xf32>
    %100 = vector.shape_cast %97 : vector<8x64xf32> to vector<1x8x64xf32>
    tpu.vector_store %arg5[%c3_82, %c0_83, %c0_84], %100 {strides = array<i32>} : memref<8x8x64xf32, #tpu.memory_space<vmem>>, vector<1x8x64xf32>,
    %101 = vector.extract_strided_slice %76 {offsets = [0, 128], sizes = [8, 32], strides = [1, 1]} : vector<8x256xf32> to vector<8x32xf32>
    %102 = vector.extract_strided_slice %60 {offsets = [0, 128], sizes = [8, 32], strides = [1, 1]} : vector<8x256xf32> to vector<8x32xf32>
    %103 = tpu.concatenate %101, %102 in 1 : vector<8x32xf32>, vector<8x32xf32> -> vector<8x64xf32>
    %c4_85 = arith.constant 4 : index
    %c0_86 = arith.constant 0 : index
    %c0_87 = arith.constant 0 : index
    %104 = vector.load %arg5[%c4_85, %c0_86, %c0_87] : memref<8x8x64xf32, #tpu.memory_space<vmem>>, vector<1x8x64xf32>
    %105 = vector.shape_cast %104 : vector<1x8x64xf32> to vector<8x64xf32>
    %106 = vector.shape_cast %103 : vector<8x64xf32> to vector<1x8x64xf32>
    tpu.vector_store %arg5[%c4_85, %c0_86, %c0_87], %106 {strides = array<i32>} : memref<8x8x64xf32, #tpu.memory_space<vmem>>, vector<1x8x64xf32>,
    %107 = vector.extract_strided_slice %76 {offsets = [0, 160], sizes = [8, 32], strides = [1, 1]} : vector<8x256xf32> to vector<8x32xf32>
    %108 = vector.extract_strided_slice %60 {offsets = [0, 160], sizes = [8, 32], strides = [1, 1]} : vector<8x256xf32> to vector<8x32xf32>
    %109 = tpu.concatenate %107, %108 in 1 : vector<8x32xf32>, vector<8x32xf32> -> vector<8x64xf32>
    %c5_88 = arith.constant 5 : index
    %c0_89 = arith.constant 0 : index
    %c0_90 = arith.constant 0 : index
    %110 = vector.load %arg5[%c5_88, %c0_89, %c0_90] : memref<8x8x64xf32, #tpu.memory_space<vmem>>, vector<1x8x64xf32>
    %111 = vector.shape_cast %110 : vector<1x8x64xf32> to vector<8x64xf32>
    %112 = vector.shape_cast %109 : vector<8x64xf32> to vector<1x8x64xf32>
    tpu.vector_store %arg5[%c5_88, %c0_89, %c0_90], %112 {strides = array<i32>} : memref<8x8x64xf32, #tpu.memory_space<vmem>>, vector<1x8x64xf32>,
    %113 = vector.extract_strided_slice %76 {offsets = [0, 192], sizes = [8, 32], strides = [1, 1]} : vector<8x256xf32> to vector<8x32xf32>
    %114 = vector.extract_strided_slice %60 {offsets = [0, 192], sizes = [8, 32], strides = [1, 1]} : vector<8x256xf32> to vector<8x32xf32>
    %115 = tpu.concatenate %113, %114 in 1 : vector<8x32xf32>, vector<8x32xf32> -> vector<8x64xf32>
    %c6_91 = arith.constant 6 : index
    %c0_92 = arith.constant 0 : index
    %c0_93 = arith.constant 0 : index
    %116 = vector.load %arg5[%c6_91, %c0_92, %c0_93] : memref<8x8x64xf32, #tpu.memory_space<vmem>>, vector<1x8x64xf32>
    %117 = vector.shape_cast %116 : vector<1x8x64xf32> to vector<8x64xf32>
    %118 = vector.shape_cast %115 : vector<8x64xf32> to vector<1x8x64xf32>
    tpu.vector_store %arg5[%c6_91, %c0_92, %c0_93], %118 {strides = array<i32>} : memref<8x8x64xf32, #tpu.memory_space<vmem>>, vector<1x8x64xf32>,
    %119 = vector.extract_strided_slice %76 {offsets = [0, 224], sizes = [8, 32], strides = [1, 1]} : vector<8x256xf32> to vector<8x32xf32>
    %120 = vector.extract_strided_slice %60 {offsets = [0, 224], sizes = [8, 32], strides = [1, 1]} : vector<8x256xf32> to vector<8x32xf32>
    %121 = tpu.concatenate %119, %120 in 1 : vector<8x32xf32>, vector<8x32xf32> -> vector<8x64xf32>
    %c7_94 = arith.constant 7 : index
    %c0_95 = arith.constant 0 : index
    %c0_96 = arith.constant 0 : index
    %122 = vector.load %arg5[%c7_94, %c0_95, %c0_96] : memref<8x8x64xf32, #tpu.memory_space<vmem>>, vector<1x8x64xf32>
    %123 = vector.shape_cast %122 : vector<1x8x64xf32> to vector<8x64xf32>
    %124 = vector.shape_cast %121 : vector<8x64xf32> to vector<1x8x64xf32>
    tpu.vector_store %arg5[%c7_94, %c0_95, %c0_96], %124 {strides = array<i32>} : memref<8x8x64xf32, #tpu.memory_space<vmem>>, vector<1x8x64xf32>,
    return
  }
  func.func @transform_0(%arg0: i32) -> (i32, i32, i32) {
    %c0_i32 = arith.constant 0 : i32
    %c0_i32_0 = arith.constant 0 : i32
    %c0_i32_1 = arith.constant 0 : i32
    return %c0_i32, %arg0, %c0_i32_0 : i32, i32, i32
  }
  func.func @transform_1(%arg0: i32) -> (i32, i32, i32) {
    %c0_i32 = arith.constant 0 : i32
    %c0_i32_0 = arith.constant 0 : i32
    %c0_i32_1 = arith.constant 0 : i32
    return %c0_i32, %arg0, %c0_i32_0 : i32, i32, i32
  }
  func.func @transform_2(%arg0: i32) -> (i32, i32, i32) {
    %c0_i32 = arith.constant 0 : i32
    %c0_i32_0 = arith.constant 0 : i32
    %c0_i32_1 = arith.constant 0 : i32
    %c0_i32_2 = arith.constant 0 : i32
    return %c0_i32, %c0_i32_0, %c0_i32_1 : i32, i32, i32
  }
  func.func @transform_3(%arg0: i32) -> (i32, i32) {
    %c0_i32 = arith.constant 0 : i32
    %c0_i32_0 = arith.constant 0 : i32
    %c0_i32_1 = arith.constant 0 : i32
    return %c0_i32, %c0_i32_0 : i32, i32
  }
  func.func @transform_4(%arg0: i32) -> (i32, i32, i32) {
    %c0_i32 = arith.constant 0 : i32
    %c0_i32_0 = arith.constant 0 : i32
    %c0_i32_1 = arith.constant 0 : i32
    return %c0_i32, %arg0, %c0_i32_0 : i32, i32, i32
  }
}

</mosaic_0001>

<llo_original>
// kernel: tpu_custom_call.1
$region0: #{tpu_custom_call.1}
  #allocation0 [shape = 'u32[]', space=smem, size = 0x4, offset = 0x4, fixed_abs, tag = 'smem constant byte address 0x4 - core index']
  #allocation1 [shape = 'u32[144,128]{1,0:T(1,128)}', space=vmem, size = 0x12000, scoped, tag = 'internal scratch']
  %s0 = inlined_call_operand.vmem [shape: f32[8,8,4], index: 0, kind: input, shape index: {}]
  %s1 = inlined_call_operand.vmem [shape: f32[8,8,12], index: 1, kind: input, shape index: {}]
  %s2 = inlined_call_operand.hbm [shape: bf16[5,256,256], index: 2, kind: input, shape index: {}]
  %s3 = inlined_call_operand.vmem [shape: f32[5,256], index: 3, kind: input, shape index: {}]
  %s4 = inlined_call_operand.hbm [shape: f32[8,8,64], index: 4, kind: output, shape index: {}]
  %s5 = sld [smem:[#allocation0]]
  $region30: #{tpu_custom_call.1} parent=0
    _
  %s7 = ssub.s32 1, %s5
  %s8 = scalar_select 0, %s7, %s5
  $region1: #{tpu_custom_call.1} parent=0
    #allocation2 [shape = 'u8[655360]{0}', space=vmem, size = 0xa0000, scoped, tag = 'input window, operand 2, single buffered']
    #allocation3 [shape = 's32[1]{0}', space=sflag, size = 0x4, scoped, tag = 'scoped memory for tpu_custom_call.1']
    #allocation4 [shape = 's32[1]{0}', space=sflag, size = 0x4, scoped, tag = 'scoped memory for tpu_custom_call.1']
    #allocation5 [shape = 'u8[32768]{0}', space=vmem, size = 0x8000, scoped, tag = 'output window, operand 0, single buffered']
    %9 = vsyncpa [#allocation3], 0
    %10 = vsyncpa [#allocation4], 0
    // Predicated region
    $region2: #{tpu_custom_call.1} parent=1 // pred_check
      _
    $region3: #{tpu_custom_call.1} parent=1 // pred_check_branch
      %12 = sbr.rel (0) target = $region5
    $region4: #{tpu_custom_call.1} parent=1 // pred_region
      _
    $region5: #{tpu_custom_call.1} parent=1 // pred_fallthru
      _
    // Predicated region
    $region6: #{tpu_custom_call.1} parent=1 // pred_check
      _
    $region7: #{tpu_custom_call.1} parent=1 // pred_check_branch
      %14 = sbr.rel (0) target = $region9
    $region8: #{tpu_custom_call.1} parent=1 // pred_region
      _
    $region9: #{tpu_custom_call.1} parent=1 // pred_fallthru
      _
    // Predicated region
    $region10: #{tpu_custom_call.1} parent=1 // pred_check
      _
    $region11: #{tpu_custom_call.1} parent=1 // pred_check_branch
      %16 = sbr.rel (0) target = $region13
    $region12: #{tpu_custom_call.1} parent=1 // pred_region
      %s18 = ssub.s32 20480, 20480
      %19 = vsyncadd [#allocation3], %s18
      %s20 = sshll.u32 [#allocation2], 4
      %s21 = int_to_ptr.vmem [resolvable:$true] %s20
      %26 = dma.hbm_to_vmem [thread:$0]  %s2, 20480, %s21, [#allocation3], 128, 128, 8
    $region13: #{tpu_custom_call.1} parent=1 // pred_fallthru
      _
    // Predicated region
    $region14: #{tpu_custom_call.1} parent=1 // pred_check
      _
    $region15: #{tpu_custom_call.1} parent=1 // pred_check_branch
      %28 = sbr.rel (0) target = $region17
    $region16: #{tpu_custom_call.1} parent=1 // pred_region
      _
    $region17: #{tpu_custom_call.1} parent=1 // pred_fallthru
      _
    // Predicated region
    $region18: #{tpu_custom_call.1} parent=1 // pred_check
      _
    $region19: #{tpu_custom_call.1} parent=1 // pred_check_branch
      %30 = sbr.rel (0) target = $region21
    $region20: #{tpu_custom_call.1} parent=1 // pred_region
      %31 = dma.done [#allocation3], 20480
    $region21: #{tpu_custom_call.1} parent=1 // pred_fallthru
      _
    %v33 = vld [vmem:[%s0] sm:$0xff]
    %v34 = vld [vmem:[%s1] sm:$0xff]
    %s35 = scalar_lea.vmem %s0, 8
    %v36 = vld [vmem:[%s35] sm:$0xff]
    %s37 = scalar_lea.vmem %s1, 8
    %v38 = vld [vmem:[%s37] sm:$0xff]
    %s39 = scalar_lea.vmem %s0, 16
    %v40 = vld [vmem:[%s39] sm:$0xff]
    %s41 = scalar_lea.vmem %s1, 16
    %v42 = vld [vmem:[%s41] sm:$0xff]
    %s43 = scalar_lea.vmem %s0, 24
    %v44 = vld [vmem:[%s43] sm:$0xff]
    %s45 = scalar_lea.vmem %s1, 24
    %v46 = vld [vmem:[%s45] sm:$0xff]
    %s47 = scalar_lea.vmem %s0, 32
    %v48 = vld [vmem:[%s47] sm:$0xff]
    %s49 = scalar_lea.vmem %s1, 32
    %v50 = vld [vmem:[%s49] sm:$0xff]
    %s51 = scalar_lea.vmem %s0, 40
    %v52 = vld [vmem:[%s51] sm:$0xff]
    %s53 = scalar_lea.vmem %s1, 40
    %v54 = vld [vmem:[%s53] sm:$0xff]
    %s55 = scalar_lea.vmem %s0, 48
    %v56 = vld [vmem:[%s55] sm:$0xff]
    %s57 = scalar_lea.vmem %s1, 48
    %v58 = vld [vmem:[%s57] sm:$0xff]
    %s59 = scalar_lea.vmem %s0, 56
    %v60 = vld [vmem:[%s59] sm:$0xff]
    %s61 = scalar_lea.vmem %s1, 56
    %v62 = vld [vmem:[%s61] sm:$0xff]
    %64 = vrot.lane.b32.xlu0 %v34, 4
    %v65 = vpop.permute.xlu0 %64
    %68 = vrot.lane.b32.xlu0 %v36, 16
    %v69 = vpop.permute.xlu0 %68
    %72 = vrot.lane.b32.xlu0 %v38, 20
    %v73 = vpop.permute.xlu0 %72
    %76 = vrot.lane.b32.xlu0 %v40, 32
    %v77 = vpop.permute.xlu0 %76
    %80 = vrot.lane.b32.xlu0 %v42, 36
    %v81 = vpop.permute.xlu0 %80
    %84 = vrot.lane.b32.xlu0 %v44, 48
    %v85 = vpop.permute.xlu0 %84
    %88 = vrot.lane.b32.xlu0 %v46, 52
    %v89 = vpop.permute.xlu0 %88
    %92 = vrot.lane.b32.xlu0 %v48, 64
    %v93 = vpop.permute.xlu0 %92
    %96 = vrot.lane.b32.xlu0 %v50, 68
    %v97 = vpop.permute.xlu0 %96
    %100 = vrot.lane.b32.xlu0 %v52, 80
    %v101 = vpop.permute.xlu0 %100
    %104 = vrot.lane.b32.xlu0 %v54, 84
    %v105 = vpop.permute.xlu0 %104
    %108 = vrot.lane.b32.xlu0 %v56, 96
    %v109 = vpop.permute.xlu0 %108
    %112 = vrot.lane.b32.xlu0 %v58, 100
    %v113 = vpop.permute.xlu0 %112
    %116 = vrot.lane.b32.xlu0 %v60, 112
    %v117 = vpop.permute.xlu0 %116
    %120 = vrot.lane.b32.xlu0 %v62, 116
    %v121 = vpop.permute.xlu0 %120
    %vm123 = vcmask 31744
    %v124 = vsel %vm123, %v33, %v65
    %vm125 = vcmask 130048
    %v126 = vsel %vm125, %v124, %v69
    %vm127 = vcmask 162816
    %v128 = vsel %vm127, %v126, %v73
    %vm129 = vcmask 261120
    %v130 = vsel %vm129, %v128, %v77
    %vm131 = vcmask 293888
    %v132 = vsel %vm131, %v130, %v81
    %vm133 = vcmask 392192
    %v134 = vsel %vm133, %v132, %v85
    %vm135 = vcmask 424960
    %v136 = vsel %vm135, %v134, %v89
    %vm137 = vcmask 523264
    %v138 = vsel %vm137, %v136, %v93
    %vm139 = vcmask 556032
    %v140 = vsel %vm139, %v138, %v97
    %vm141 = vcmask 654336
    %v142 = vsel %vm141, %v140, %v101
    %vm143 = vcmask 687104
    %v144 = vsel %vm143, %v142, %v105
    %vm145 = vcmask 785408
    %v146 = vsel %vm145, %v144, %v109
    %vm147 = vcmask 818176
    %v148 = vsel %vm147, %v146, %v113
    %vm149 = vcmask 916480
    %v150 = vsel %vm149, %v148, %v117
    %vm151 = vcmask 949248
    %v152 = vsel %vm151, %v150, %v121
    %v153 = vld [vmem:[#allocation2] sm:$0xff]
    %v154 = vld [vmem:[#allocation2 + $0x8] sm:$0xff]
    %v155 = vld [vmem:[#allocation2 + $0x10] sm:$0xff]
    %v156 = vld [vmem:[#allocation2 + $0x18] sm:$0xff]
    %v157 = vld [vmem:[#allocation2 + $0x20] sm:$0xff]
    %v158 = vld [vmem:[#allocation2 + $0x28] sm:$0xff]
    %v159 = vld [vmem:[#allocation2 + $0x30] sm:$0xff]
    %v160 = vld [vmem:[#allocation2 + $0x38] sm:$0xff]
    %v161 = vld [vmem:[#allocation2 + $0x40] sm:$0xff]
    %v162 = vld [vmem:[#allocation2 + $0x48] sm:$0xff]
    %v163 = vld [vmem:[#allocation2 + $0x50] sm:$0xff]
    %v164 = vld [vmem:[#allocation2 + $0x58] sm:$0xff]
    %v165 = vld [vmem:[#allocation2 + $0x60] sm:$0xff]
    %v166 = vld [vmem:[#allocation2 + $0x68] sm:$0xff]
    %v167 = vld [vmem:[#allocation2 + $0x70] sm:$0xff]
    %v168 = vld [vmem:[#allocation2 + $0x78] sm:$0xff]
    %v169 = vpack.c.bf16 %v152, %v152
    %v170 = vld [vmem:[%s3] ss:$8 sm:$0x3]
    %v172 = vlaneseq
    %v173 = vshrl.u32 %v172, 7
    %v174 = vsub.s32 0, %v173
    %v175 = vrot.slane %v170, %v174
    %v176 = vlaneseq
    %v177 = vshrl.u32 %v176, 7
    %v178 = vsub.s32 1, %v177
    %v179 = vrot.slane %v170, %v178
    %v198 = vunpack.c.l.b16 %v153
    %v199 = vunpack.c.h.b16 %v153
    %v200 = vunpack.c.l.b16 %v154
    %v201 = vunpack.c.h.b16 %v154
    %v202 = vunpack.c.l.b16 %v155
    %v203 = vunpack.c.h.b16 %v155
    %v204 = vunpack.c.l.b16 %v156
    %v205 = vunpack.c.h.b16 %v156
    %v206 = vunpack.c.l.b16 %v157
    %v207 = vunpack.c.h.b16 %v157
    %v208 = vunpack.c.l.b16 %v158
    %v209 = vunpack.c.h.b16 %v158
    %v210 = vunpack.c.l.b16 %v159
    %v211 = vunpack.c.h.b16 %v159
    %v212 = vunpack.c.l.b16 %v160
    %v213 = vunpack.c.h.b16 %v160
    %v214 = vunpack.c.l.b16 %v161
    %v215 = vunpack.c.h.b16 %v161
    %v216 = vunpack.c.l.b16 %v162
    %v217 = vunpack.c.h.b16 %v162
    %v218 = vunpack.c.l.b16 %v163
    %v219 = vunpack.c.h.b16 %v163
    %v220 = vunpack.c.l.b16 %v164
    %v221 = vunpack.c.h.b16 %v164
    %v222 = vunpack.c.l.b16 %v165
    %v223 = vunpack.c.h.b16 %v165
    %v224 = vunpack.c.l.b16 %v166
    %v225 = vunpack.c.h.b16 %v166
    %v226 = vunpack.c.l.b16 %v167
    %v227 = vunpack.c.h.b16 %v167
    %v228 = vunpack.c.l.b16 %v168
    %v229 = vunpack.c.h.b16 %v168
    %v230 = vpack.c.b16 %v200, %v198
    %v231 = vpack.c.b16 %v201, %v199
    %v232 = vpack.c.b16 %v204, %v202
    %v233 = vpack.c.b16 %v205, %v203
    %v234 = vpack.c.b16 %v208, %v206
    %v235 = vpack.c.b16 %v209, %v207
    %v236 = vpack.c.b16 %v212, %v210
    %v237 = vpack.c.b16 %v213, %v211
    %v238 = vpack.c.b16 %v216, %v214
    %v239 = vpack.c.b16 %v217, %v215
    %v240 = vpack.c.b16 %v220, %v218
    %v241 = vpack.c.b16 %v221, %v219
    %v242 = vpack.c.b16 %v224, %v222
    %v243 = vpack.c.b16 %v225, %v223
    %v244 = vpack.c.b16 %v228, %v226
    %v245 = vpack.c.b16 %v229, %v227
    %262 = vmatprep.subr.bf16.mxu0 %v231
    %263 = vmatpush1.bf16.msra.mxu0 %v230
    %264 = vmatprep.subr.bf16.mxu0 %v233
    %265 = vmatpush1.bf16.msra.mxu0 %v232
    %266 = vmatprep.subr.bf16.mxu0 %v235
    %267 = vmatpush1.bf16.msra.mxu0 %v234
    %268 = vmatprep.subr.bf16.mxu0 %v237
    %269 = vmatpush1.bf16.msra.mxu0 %v236
    %270 = vmatprep.subr.bf16.mxu0 %v239
    %271 = vmatpush1.bf16.msra.mxu0 %v238
    %272 = vmatprep.subr.bf16.mxu0 %v241
    %273 = vmatpush1.bf16.msra.mxu0 %v240
    %274 = vmatprep.subr.bf16.mxu0 %v243
    %275 = vmatpush1.bf16.msra.mxu0 %v242
    %276 = vmatprep.subr.bf16.mxu0 %v245
    %277 = vmatpush1.bf16.msra.mxu0 %v244
    %278 = vmatprep.subr.bf16.mxu0 0
    %279 = vmatpush1.bf16.msra.mxu0 0
    %280 = vmatprep.subr.bf16.mxu0 0
    %281 = vmatpush1.bf16.msra.mxu0 0
    %282 = vmatprep.subr.bf16.mxu0 0
    %283 = vmatpush1.bf16.msra.mxu0 0
    %284 = vmatprep.subr.bf16.mxu0 0
    %285 = vmatpush1.bf16.msra.mxu0 0
    %286 = vmatprep.subr.bf16.mxu0 0
    %287 = vmatpush1.bf16.msra.mxu0 0
    %288 = vmatprep.subr.bf16.mxu0 0
    %289 = vmatpush1.bf16.msra.mxu0 0
    %290 = vmatprep.subr.bf16.mxu0 0
    %291 = vmatpush1.bf16.msra.mxu0 0
    %292 = vmatprep.subr.bf16.mxu0 0
    %293 = vmatpush1.bf16.msra.mxu0 0
    %294 = vmatprep.mubr.bf16.mxu0 0
    %295 = vmatmul.mubr.bf16.gmra.mrb[0].mxu0 %v169
    %v296 = vpop.f32.mrb[0].mxu0
    %v297 = vadd.f32 %v175, %v296
    %v298 = vpop.f32.mrb[0].mxu0
    %v299 = vadd.f32 %v179, %v298
    %v300 = vpop.f32.mrb[0].mxu0
    %v301 = vpop.f32.mrb[0].mxu0
    %302 = vdwg.mxu0
    %v303 = vmax.f32 %v297, 0.0
    %v304 = vmax.f32 %v299, 0.0
    %s305 = scalar_lea.vmem [#allocation2], 256
    %v306 = vld [vmem:[%s305] sm:$0xff]
    %v307 = vld [vmem:[%s305 + $0x8] sm:$0xff]
    %v308 = vld [vmem:[%s305 + $0x10] sm:$0xff]
    %v309 = vld [vmem:[%s305 + $0x18] sm:$0xff]
    %v310 = vld [vmem:[%s305 + $0x20] sm:$0xff]
    %v311 = vld [vmem:[%s305 + $0x28] sm:$0xff]
    %v312 = vld [vmem:[%s305 + $0x30] sm:$0xff]
    %v313 = vld [vmem:[%s305 + $0x38] sm:$0xff]
    %v314 = vld [vmem:[%s305 + $0x40] sm:$0xff]
    %v315 = vld [vmem:[%s305 + $0x48] sm:$0xff]
    %v316 = vld [vmem:[%s305 + $0x50] sm:$0xff]
    %v317 = vld [vmem:[%s305 + $0x58] sm:$0xff]
    %v318 = vld [vmem:[%s305 + $0x60] sm:$0xff]
    %v319 = vld [vmem:[%s305 + $0x68] sm:$0xff]
    %v320 = vld [vmem:[%s305 + $0x70] sm:$0xff]
    %v321 = vld [vmem:[%s305 + $0x78] sm:$0xff]
    %v322 = vld [vmem:[%s305 + $0x80] sm:$0xff]
    %v323 = vld [vmem:[%s305 + $0x88] sm:$0xff]
    %v324 = vld [vmem:[%s305 + $0x90] sm:$0xff]
    %v325 = vld [vmem:[%s305 + $0x98] sm:$0xff]
    %v326 = vld [vmem:[%s305 + $0xa0] sm:$0xff]
    %v327 = vld [vmem:[%s305 + $0xa8] sm:$0xff]
    %v328 = vld [vmem:[%s305 + $0xb0] sm:$0xff]
    %v329 = vld [vmem:[%s305 + $0xb8] sm:$0xff]
    %v330 = vld [vmem:[%s305 + $0xc0] sm:$0xff]
    %v331 = vld [vmem:[%s305 + $0xc8] sm:$0xff]
    %v332 = vld [vmem:[%s305 + $0xd0] sm:$0xff]
    %v333 = vld [vmem:[%s305 + $0xd8] sm:$0xff]
    %v334 = vld [vmem:[%s305 + $0xe0] sm:$0xff]
    %v335 = vld [vmem:[%s305 + $0xe8] sm:$0xff]
    %v336 = vld [vmem:[%s305 + $0xf0] sm:$0xff]
    %v337 = vld [vmem:[%s305 + $0xf8] sm:$0xff]
    %v338 = vpack.c.bf16 %v303, %v303
    %v339 = vpack.c.bf16 %v304, %v304
    %s340 = scalar_lea.vmem %s3, 1
    %v341 = vld [vmem:[%s340] ss:$8 sm:$0x3]
    %v343 = vlaneseq
    %v344 = vshrl.u32 %v343, 7
    %v345 = vsub.s32 0, %v344
    %v346 = vrot.slane %v341, %v345
    %v347 = vlaneseq
    %v348 = vshrl.u32 %v347, 7
    %v349 = vsub.s32 1, %v348
    %v350 = vrot.slane %v341, %v349
    %v385 = vunpack.c.l.b16 %v306
    %v386 = vunpack.c.h.b16 %v306
    %v387 = vunpack.c.l.b16 %v307
    %v388 = vunpack.c.h.b16 %v307
    %v389 = vunpack.c.l.b16 %v308
    %v390 = vunpack.c.h.b16 %v308
    %v391 = vunpack.c.l.b16 %v309
    %v392 = vunpack.c.h.b16 %v309
    %v393 = vunpack.c.l.b16 %v310
    %v394 = vunpack.c.h.b16 %v310
    %v395 = vunpack.c.l.b16 %v311
    %v396 = vunpack.c.h.b16 %v311
    %v397 = vunpack.c.l.b16 %v312
    %v398 = vunpack.c.h.b16 %v312
    %v399 = vunpack.c.l.b16 %v313
    %v400 = vunpack.c.h.b16 %v313
    %v401 = vunpack.c.l.b16 %v314
    %v402 = vunpack.c.h.b16 %v314
    %v403 = vunpack.c.l.b16 %v315
    %v404 = vunpack.c.h.b16 %v315
    %v405 = vunpack.c.l.b16 %v316
    %v406 = vunpack.c.h.b16 %v316
    %v407 = vunpack.c.l.b16 %v317
    %v408 = vunpack.c.h.b16 %v317
    %v409 = vunpack.c.l.b16 %v318
    %v410 = vunpack.c.h.b16 %v318
    %v411 = vunpack.c.l.b16 %v319
    %v412 = vunpack.c.h.b16 %v319
    %v413 = vunpack.c.l.b16 %v320
    %v414 = vunpack.c.h.b16 %v320
    %v415 = vunpack.c.l.b16 %v321
    %v416 = vunpack.c.h.b16 %v321
    %v417 = vunpack.c.l.b16 %v322
    %v418 = vunpack.c.h.b16 %v322
    %v419 = vunpack.c.l.b16 %v323
    %v420 = vunpack.c.h.b16 %v323
    %v421 = vunpack.c.l.b16 %v324
    %v422 = vunpack.c.h.b16 %v324
    %v423 = vunpack.c.l.b16 %v325
    %v424 = vunpack.c.h.b16 %v325
    %v425 = vunpack.c.l.b16 %v326
    %v426 = vunpack.c.h.b16 %v326
    %v427 = vunpack.c.l.b16 %v327
    %v428 = vunpack.c.h.b16 %v327
    %v429 = vunpack.c.l.b16 %v328
    %v430 = vunpack.c.h.b16 %v328
    %v431 = vunpack.c.l.b16 %v329
    %v432 = vunpack.c.h.b16 %v329
    %v433 = vunpack.c.l.b16 %v330
    %v434 = vunpack.c.h.b16 %v330
    %v435 = vunpack.c.l.b16 %v331
    %v436 = vunpack.c.h.b16 %v331
    %v437 = vunpack.c.l.b16 %v332
    %v438 = vunpack.c.h.b16 %v332
    %v439 = vunpack.c.l.b16 %v333
    %v440 = vunpack.c.h.b16 %v333
    %v441 = vunpack.c.l.b16 %v334
    %v442 = vunpack.c.h.b16 %v334
    %v443 = vunpack.c.l.b16 %v335
    %v444 = vunpack.c.h.b16 %v335
    %v445 = vunpack.c.l.b16 %v336
    %v446 = vunpack.c.h.b16 %v336
    %v447 = vunpack.c.l.b16 %v337
    %v448 = vunpack.c.h.b16 %v337
    %v449 = vpack.c.b16 %v387, %v385
    %v450 = vpack.c.b16 %v388, %v386
    %v451 = vpack.c.b16 %v391, %v389
    %v452 = vpack.c.b16 %v392, %v390
    %v453 = vpack.c.b16 %v395, %v393
    %v454 = vpack.c.b16 %v396, %v394
    %v455 = vpack.c.b16 %v399, %v397
    %v456 = vpack.c.b16 %v400, %v398
    %v457 = vpack.c.b16 %v403, %v401
    %v458 = vpack.c.b16 %v404, %v402
    %v459 = vpack.c.b16 %v407, %v405
    %v460 = vpack.c.b16 %v408, %v406
    %v461 = vpack.c.b16 %v411, %v409
    %v462 = vpack.c.b16 %v412, %v410
    %v463 = vpack.c.b16 %v415, %v413
    %v464 = vpack.c.b16 %v416, %v414
    %v465 = vpack.c.b16 %v419, %v417
    %v466 = vpack.c.b16 %v420, %v418
    %v467 = vpack.c.b16 %v423, %v421
    %v468 = vpack.c.b16 %v424, %v422
    %v469 = vpack.c.b16 %v427, %v425
    %v470 = vpack.c.b16 %v428, %v426
    %v471 = vpack.c.b16 %v431, %v429
    %v472 = vpack.c.b16 %v432, %v430
    %v473 = vpack.c.b16 %v435, %v433
    %v474 = vpack.c.b16 %v436, %v434
    %v475 = vpack.c.b16 %v439, %v437
    %v476 = vpack.c.b16 %v440, %v438
    %v477 = vpack.c.b16 %v443, %v441
    %v478 = vpack.c.b16 %v444, %v442
    %v479 = vpack.c.b16 %v447, %v445
    %v480 = vpack.c.b16 %v448, %v446
    %513 = vmatprep.subr.bf16.mxu0 %v450
    %514 = vmatpush1.bf16.msra.mxu0 %v449
    %515 = vmatprep.subr.bf16.mxu0 %v452
    %516 = vmatpush1.bf16.msra.mxu0 %v451
    %517 = vmatprep.subr.bf16.mxu0 %v454
    %518 = vmatpush1.bf16.msra.mxu0 %v453
    %519 = vmatprep.subr.bf16.mxu0 %v456
    %520 = vmatpush1.bf16.msra.mxu0 %v455
    %521 = vmatprep.subr.bf16.mxu0 %v458
    %522 = vmatpush1.bf16.msra.mxu0 %v457
    %523 = vmatprep.subr.bf16.mxu0 %v460
    %524 = vmatpush1.bf16.msra.mxu0 %v459
    %525 = vmatprep.subr.bf16.mxu0 %v462
    %526 = vmatpush1.bf16.msra.mxu0 %v461
    %527 = vmatprep.subr.bf16.mxu0 %v464
    %528 = vmatpush1.bf16.msra.mxu0 %v463
    %529 = vmatprep.subr.bf16.mxu0 %v466
    %530 = vmatpush1.bf16.msra.mxu0 %v465
    %531 = vmatprep.subr.bf16.mxu0 %v468
    %532 = vmatpush1.bf16.msra.mxu0 %v467
    %533 = vmatprep.subr.bf16.mxu0 %v470
    %534 = vmatpush1.bf16.msra.mxu0 %v469
    %535 = vmatprep.subr.bf16.mxu0 %v472
    %536 = vmatpush1.bf16.msra.mxu0 %v471
    %537 = vmatprep.subr.bf16.mxu0 %v474
    %538 = vmatpush1.bf16.msra.mxu0 %v473
    %539 = vmatprep.subr.bf16.mxu0 %v476
    %540 = vmatpush1.bf16.msra.mxu0 %v475
    %541 = vmatprep.subr.bf16.mxu0 %v478
    %542 = vmatpush1.bf16.msra.mxu0 %v477
    %543 = vmatprep.subr.bf16.mxu0 %v480
    %544 = vmatpush1.bf16.msra.mxu0 %v479
    %545 = vmatprep.mubr.bf16.mxu0 %v339
    %546 = vmatmul.mubr.bf16.gmra.mrb[0].mxu0 %v338
    %v547 = vpop.f32.mrb[0].mxu0
    %v548 = vadd.f32 %v346, %v547
    %v549 = vpop.f32.mrb[0].mxu0
    %v550 = vadd.f32 %v350, %v549
    %v551 = vpop.f32.mrb[0].mxu0
    %v552 = vpop.f32.mrb[0].mxu0
    %553 = vdwg.mxu0
    %v554 = vmax.f32 %v548, 0.0
    %v555 = vmax.f32 %v550, 0.0
    %s556 = scalar_lea.vmem [#allocation2], 512
    %v557 = vld [vmem:[%s556] sm:$0xff]
    %v558 = vld [vmem:[%s556 + $0x8] sm:$0xff]
    %v559 = vld [vmem:[%s556 + $0x10] sm:$0xff]
    %v560 = vld [vmem:[%s556 + $0x18] sm:$0xff]
    %v561 = vld [vmem:[%s556 + $0x20] sm:$0xff]
    %v562 = vld [vmem:[%s556 + $0x28] sm:$0xff]
    %v563 = vld [vmem:[%s556 + $0x30] sm:$0xff]
    %v564 = vld [vmem:[%s556 + $0x38] sm:$0xff]
    %v565 = vld [vmem:[%s556 + $0x40] sm:$0xff]
    %v566 = vld [vmem:[%s556 + $0x48] sm:$0xff]
    %v567 = vld [vmem:[%s556 + $0x50] sm:$0xff]
    %v568 = vld [vmem:[%s556 + $0x58] sm:$0xff]
    %v569 = vld [vmem:[%s556 + $0x60] sm:$0xff]
    %v570 = vld [vmem:[%s556 + $0x68] sm:$0xff]
    %v571 = vld [vmem:[%s556 + $0x70] sm:$0xff]
    %v572 = vld [vmem:[%s556 + $0x78] sm:$0xff]
    %v573 = vld [vmem:[%s556 + $0x80] sm:$0xff]
    %v574 = vld [vmem:[%s556 + $0x88] sm:$0xff]
    %v575 = vld [vmem:[%s556 + $0x90] sm:$0xff]
    %v576 = vld [vmem:[%s556 + $0x98] sm:$0xff]
    %v577 = vld [vmem:[%s556 + $0xa0] sm:$0xff]
    %v578 = vld [vmem:[%s556 + $0xa8] sm:$0xff]
    %v579 = vld [vmem:[%s556 + $0xb0] sm:$0xff]
    %v580 = vld [vmem:[%s556 + $0xb8] sm:$0xff]
    %v581 = vld [vmem:[%s556 + $0xc0] sm:$0xff]
    %v582 = vld [vmem:[%s556 + $0xc8] sm:$0xff]
    %v583 = vld [vmem:[%s556 + $0xd0] sm:$0xff]
    %v584 = vld [vmem:[%s556 + $0xd8] sm:$0xff]
    %v585 = vld [vmem:[%s556 + $0xe0] sm:$0xff]
    %v586 = vld [vmem:[%s556 + $0xe8] sm:$0xff]
    %v587 = vld [vmem:[%s556 + $0xf0] sm:$0xff]
    %v588 = vld [vmem:[%s556 + $0xf8] sm:$0xff]
    %v589 = vpack.c.bf16 %v554, %v554
    %v590 = vpack.c.bf16 %v555, %v555
    %s591 = scalar_lea.vmem %s3, 2
    %v592 = vld [vmem:[%s591] ss:$8 sm:$0x3]
    %v594 = vlaneseq
    %v595 = vshrl.u32 %v594, 7
    %v596 = vsub.s32 0, %v595
    %v597 = vrot.slane %v592, %v596
    %v598 = vlaneseq
    %v599 = vshrl.u32 %v598, 7
    %v600 = vsub.s32 1, %v599
    %v601 = vrot.slane %v592, %v600
    %v636 = vunpack.c.l.b16 %v557
    %v637 = vunpack.c.h.b16 %v557
    %v638 = vunpack.c.l.b16 %v558
    %v639 = vunpack.c.h.b16 %v558
    %v640 = vunpack.c.l.b16 %v559
    %v641 = vunpack.c.h.b16 %v559
    %v642 = vunpack.c.l.b16 %v560
    %v643 = vunpack.c.h.b16 %v560
    %v644 = vunpack.c.l.b16 %v561
    %v645 = vunpack.c.h.b16 %v561
    %v646 = vunpack.c.l.b16 %v562
    %v647 = vunpack.c.h.b16 %v562
    %v648 = vunpack.c.l.b16 %v563
    %v649 = vunpack.c.h.b16 %v563
    %v650 = vunpack.c.l.b16 %v564
    %v651 = vunpack.c.h.b16 %v564
    %v652 = vunpack.c.l.b16 %v565
    %v653 = vunpack.c.h.b16 %v565
    %v654 = vunpack.c.l.b16 %v566
    %v655 = vunpack.c.h.b16 %v566
    %v656 = vunpack.c.l.b16 %v567
    %v657 = vunpack.c.h.b16 %v567
    %v658 = vunpack.c.l.b16 %v568
    %v659 = vunpack.c.h.b16 %v568
    %v660 = vunpack.c.l.b16 %v569
    %v661 = vunpack.c.h.b16 %v569
    %v662 = vunpack.c.l.b16 %v570
    %v663 = vunpack.c.h.b16 %v570
    %v664 = vunpack.c.l.b16 %v571
    %v665 = vunpack.c.h.b16 %v571
    %v666 = vunpack.c.l.b16 %v572
    %v667 = vunpack.c.h.b16 %v572
    %v668 = vunpack.c.l.b16 %v573
    %v669 = vunpack.c.h.b16 %v573
    %v670 = vunpack.c.l.b16 %v574
    %v671 = vunpack.c.h.b16 %v574
    %v672 = vunpack.c.l.b16 %v575
    %v673 = vunpack.c.h.b16 %v575
    %v674 = vunpack.c.l.b16 %v576
    %v675 = vunpack.c.h.b16 %v576
    %v676 = vunpack.c.l.b16 %v577
    %v677 = vunpack.c.h.b16 %v577
    %v678 = vunpack.c.l.b16 %v578
    %v679 = vunpack.c.h.b16 %v578
    %v680 = vunpack.c.l.b16 %v579
    %v681 = vunpack.c.h.b16 %v579
    %v682 = vunpack.c.l.b16 %v580
    %v683 = vunpack.c.h.b16 %v580
    %v684 = vunpack.c.l.b16 %v581
    %v685 = vunpack.c.h.b16 %v581
    %v686 = vunpack.c.l.b16 %v582
    %v687 = vunpack.c.h.b16 %v582
    %v688 = vunpack.c.l.b16 %v583
    %v689 = vunpack.c.h.b16 %v583
    %v690 = vunpack.c.l.b16 %v584
    %v691 = vunpack.c.h.b16 %v584
    %v692 = vunpack.c.l.b16 %v585
    %v693 = vunpack.c.h.b16 %v585
    %v694 = vunpack.c.l.b16 %v586
    %v695 = vunpack.c.h.b16 %v586
    %v696 = vunpack.c.l.b16 %v587
    %v697 = vunpack.c.h.b16 %v587
    %v698 = vunpack.c.l.b16 %v588
    %v699 = vunpack.c.h.b16 %v588
    %v700 = vpack.c.b16 %v638, %v636
    %v701 = vpack.c.b16 %v639, %v637
    %v702 = vpack.c.b16 %v642, %v640
    %v703 = vpack.c.b16 %v643, %v641
    %v704 = vpack.c.b16 %v646, %v644
    %v705 = vpack.c.b16 %v647, %v645
    %v706 = vpack.c.b16 %v650, %v648
    %v707 = vpack.c.b16 %v651, %v649
    %v708 = vpack.c.b16 %v654, %v652
    %v709 = vpack.c.b16 %v655, %v653
    %v710 = vpack.c.b16 %v658, %v656
    %v711 = vpack.c.b16 %v659, %v657
    %v712 = vpack.c.b16 %v662, %v660
    %v713 = vpack.c.b16 %v663, %v661
    %v714 = vpack.c.b16 %v666, %v664
    %v715 = vpack.c.b16 %v667, %v665
    %v716 = vpack.c.b16 %v670, %v668
    %v717 = vpack.c.b16 %v671, %v669
    %v718 = vpack.c.b16 %v674, %v672
    %v719 = vpack.c.b16 %v675, %v673
    %v720 = vpack.c.b16 %v678, %v676
    %v721 = vpack.c.b16 %v679, %v677
    %v722 = vpack.c.b16 %v682, %v680
    %v723 = vpack.c.b16 %v683, %v681
    %v724 = vpack.c.b16 %v686, %v684
    %v725 = vpack.c.b16 %v687, %v685
    %v726 = vpack.c.b16 %v690, %v688
    %v727 = vpack.c.b16 %v691, %v689
    %v728 = vpack.c.b16 %v694, %v692
    %v729 = vpack.c.b16 %v695, %v693
    %v730 = vpack.c.b16 %v698, %v696
    %v731 = vpack.c.b16 %v699, %v697
    %764 = vmatprep.subr.bf16.mxu0 %v701
    %765 = vmatpush1.bf16.msra.mxu0 %v700
    %766 = vmatprep.subr.bf16.mxu0 %v703
    %767 = vmatpush1.bf16.msra.mxu0 %v702
    %768 = vmatprep.subr.bf16.mxu0 %v705
    %769 = vmatpush1.bf16.msra.mxu0 %v704
    %770 = vmatprep.subr.bf16.mxu0 %v707
    %771 = vmatpush1.bf16.msra.mxu0 %v706
    %772 = vmatprep.subr.bf16.mxu0 %v709
    %773 = vmatpush1.bf16.msra.mxu0 %v708
    %774 = vmatprep.subr.bf16.mxu0 %v711
    %775 = vmatpush1.bf16.msra.mxu0 %v710
    %776 = vmatprep.subr.bf16.mxu0 %v713
    %777 = vmatpush1.bf16.msra.mxu0 %v712
    %778 = vmatprep.subr.bf16.mxu0 %v715
    %779 = vmatpush1.bf16.msra.mxu0 %v714
    %780 = vmatprep.subr.bf16.mxu0 %v717
    %781 = vmatpush1.bf16.msra.mxu0 %v716
    %782 = vmatprep.subr.bf16.mxu0 %v719
    %783 = vmatpush1.bf16.msra.mxu0 %v718
    %784 = vmatprep.subr.bf16.mxu0 %v721
    %785 = vmatpush1.bf16.msra.mxu0 %v720
    %786 = vmatprep.subr.bf16.mxu0 %v723
    %787 = vmatpush1.bf16.msra.mxu0 %v722
    %788 = vmatprep.subr.bf16.mxu0 %v725
    %789 = vmatpush1.bf16.msra.mxu0 %v724
    %790 = vmatprep.subr.bf16.mxu0 %v727
    %791 = vmatpush1.bf16.msra.mxu0 %v726
    %792 = vmatprep.subr.bf16.mxu0 %v729
    %793 = vmatpush1.bf16.msra.mxu0 %v728
    %794 = vmatprep.subr.bf16.mxu0 %v731
    %795 = vmatpush1.bf16.msra.mxu0 %v730
    %796 = vmatprep.mubr.bf16.mxu0 %v590
    %797 = vmatmul.mubr.bf16.gmra.mrb[0].mxu0 %v589
    %v798 = vpop.f32.mrb[0].mxu0
    %v799 = vadd.f32 %v597, %v798
    %v800 = vpop.f32.mrb[0].mxu0
    %v801 = vadd.f32 %v601, %v800
    %v802 = vpop.f32.mrb[0].mxu0
    %v803 = vpop.f32.mrb[0].mxu0
    %804 = vdwg.mxu0
    %v805 = vmax.f32 %v799, 0.0
    %v806 = vmax.f32 %v801, 0.0
    %s807 = scalar_lea.vmem [#allocation2], 768
    %v808 = vld [vmem:[%s807] sm:$0xff]
    %v809 = vld [vmem:[%s807 + $0x8] sm:$0xff]
    %v810 = vld [vmem:[%s807 + $0x10] sm:$0xff]
    %v811 = vld [vmem:[%s807 + $0x18] sm:$0xff]
    %v812 = vld [vmem:[%s807 + $0x20] sm:$0xff]
    %v813 = vld [vmem:[%s807 + $0x28] sm:$0xff]
    %v814 = vld [vmem:[%s807 + $0x30] sm:$0xff]
    %v815 = vld [vmem:[%s807 + $0x38] sm:$0xff]
    %v816 = vld [vmem:[%s807 + $0x40] sm:$0xff]
    %v817 = vld [vmem:[%s807 + $0x48] sm:$0xff]
    %v818 = vld [vmem:[%s807 + $0x50] sm:$0xff]
    %v819 = vld [vmem:[%s807 + $0x58] sm:$0xff]
    %v820 = vld [vmem:[%s807 + $0x60] sm:$0xff]
    %v821 = vld [vmem:[%s807 + $0x68] sm:$0xff]
    %v822 = vld [vmem:[%s807 + $0x70] sm:$0xff]
    %v823 = vld [vmem:[%s807 + $0x78] sm:$0xff]
    %v824 = vld [vmem:[%s807 + $0x80] sm:$0xff]
    %v825 = vld [vmem:[%s807 + $0x88] sm:$0xff]
    %v826 = vld [vmem:[%s807 + $0x90] sm:$0xff]
    %v827 = vld [vmem:[%s807 + $0x98] sm:$0xff]
    %v828 = vld [vmem:[%s807 + $0xa0] sm:$0xff]
    %v829 = vld [vmem:[%s807 + $0xa8] sm:$0xff]
    %v830 = vld [vmem:[%s807 + $0xb0] sm:$0xff]
    %v831 = vld [vmem:[%s807 + $0xb8] sm:$0xff]
    %v832 = vld [vmem:[%s807 + $0xc0] sm:$0xff]
    %v833 = vld [vmem:[%s807 + $0xc8] sm:$0xff]
    %v834 = vld [vmem:[%s807 + $0xd0] sm:$0xff]
    %v835 = vld [vmem:[%s807 + $0xd8] sm:$0xff]
    %v836 = vld [vmem:[%s807 + $0xe0] sm:$0xff]
    %v837 = vld [vmem:[%s807 + $0xe8] sm:$0xff]
    %v838 = vld [vmem:[%s807 + $0xf0] sm:$0xff]
    %v839 = vld [vmem:[%s807 + $0xf8] sm:$0xff]
    %v840 = vpack.c.bf16 %v805, %v805
    %v841 = vpack.c.bf16 %v806, %v806
    %s842 = scalar_lea.vmem %s3, 3
    %v843 = vld [vmem:[%s842] ss:$8 sm:$0x3]
    %v845 = vlaneseq
    %v846 = vshrl.u32 %v845, 7
    %v847 = vsub.s32 0, %v846
    %v848 = vrot.slane %v843, %v847
    %v849 = vlaneseq
    %v850 = vshrl.u32 %v849, 7
    %v851 = vsub.s32 1, %v850
    %v852 = vrot.slane %v843, %v851
    %v887 = vunpack.c.l.b16 %v808
    %v888 = vunpack.c.h.b16 %v808
    %v889 = vunpack.c.l.b16 %v809
    %v890 = vunpack.c.h.b16 %v809
    %v891 = vunpack.c.l.b16 %v810
    %v892 = vunpack.c.h.b16 %v810
    %v893 = vunpack.c.l.b16 %v811
    %v894 = vunpack.c.h.b16 %v811
    %v895 = vunpack.c.l.b16 %v812
    %v896 = vunpack.c.h.b16 %v812
    %v897 = vunpack.c.l.b16 %v813
    %v898 = vunpack.c.h.b16 %v813
    %v899 = vunpack.c.l.b16 %v814
    %v900 = vunpack.c.h.b16 %v814
    %v901 = vunpack.c.l.b16 %v815
    %v902 = vunpack.c.h.b16 %v815
    %v903 = vunpack.c.l.b16 %v816
    %v904 = vunpack.c.h.b16 %v816
    %v905 = vunpack.c.l.b16 %v817
    %v906 = vunpack.c.h.b16 %v817
    %v907 = vunpack.c.l.b16 %v818
    %v908 = vunpack.c.h.b16 %v818
    %v909 = vunpack.c.l.b16 %v819
    %v910 = vunpack.c.h.b16 %v819
    %v911 = vunpack.c.l.b16 %v820
    %v912 = vunpack.c.h.b16 %v820
    %v913 = vunpack.c.l.b16 %v821
    %v914 = vunpack.c.h.b16 %v821
    %v915 = vunpack.c.l.b16 %v822
    %v916 = vunpack.c.h.b16 %v822
    %v917 = vunpack.c.l.b16 %v823
    %v918 = vunpack.c.h.b16 %v823
    %v919 = vunpack.c.l.b16 %v824
    %v920 = vunpack.c.h.b16 %v824
    %v921 = vunpack.c.l.b16 %v825
    %v922 = vunpack.c.h.b16 %v825
    %v923 = vunpack.c.l.b16 %v826
    %v924 = vunpack.c.h.b16 %v826
    %v925 = vunpack.c.l.b16 %v827
    %v926 = vunpack.c.h.b16 %v827
    %v927 = vunpack.c.l.b16 %v828
    %v928 = vunpack.c.h.b16 %v828
    %v929 = vunpack.c.l.b16 %v829
    %v930 = vunpack.c.h.b16 %v829
    %v931 = vunpack.c.l.b16 %v830
    %v932 = vunpack.c.h.b16 %v830
    %v933 = vunpack.c.l.b16 %v831
    %v934 = vunpack.c.h.b16 %v831
    %v935 = vunpack.c.l.b16 %v832
    %v936 = vunpack.c.h.b16 %v832
    %v937 = vunpack.c.l.b16 %v833
    %v938 = vunpack.c.h.b16 %v833
    %v939 = vunpack.c.l.b16 %v834
    %v940 = vunpack.c.h.b16 %v834
    %v941 = vunpack.c.l.b16 %v835
    %v942 = vunpack.c.h.b16 %v835
    %v943 = vunpack.c.l.b16 %v836
    %v944 = vunpack.c.h.b16 %v836
    %v945 = vunpack.c.l.b16 %v837
    %v946 = vunpack.c.h.b16 %v837
    %v947 = vunpack.c.l.b16 %v838
    %v948 = vunpack.c.h.b16 %v838
    %v949 = vunpack.c.l.b16 %v839
    %v950 = vunpack.c.h.b16 %v839
    %v951 = vpack.c.b16 %v889, %v887
    %v952 = vpack.c.b16 %v890, %v888
    %v953 = vpack.c.b16 %v893, %v891
    %v954 = vpack.c.b16 %v894, %v892
    %v955 = vpack.c.b16 %v897, %v895
    %v956 = vpack.c.b16 %v898, %v896
    %v957 = vpack.c.b16 %v901, %v899
    %v958 = vpack.c.b16 %v902, %v900
    %v959 = vpack.c.b16 %v905, %v903
    %v960 = vpack.c.b16 %v906, %v904
    %v961 = vpack.c.b16 %v909, %v907
    %v962 = vpack.c.b16 %v910, %v908
    %v963 = vpack.c.b16 %v913, %v911
    %v964 = vpack.c.b16 %v914, %v912
    %v965 = vpack.c.b16 %v917, %v915
    %v966 = vpack.c.b16 %v918, %v916
    %v967 = vpack.c.b16 %v921, %v919
    %v968 = vpack.c.b16 %v922, %v920
    %v969 = vpack.c.b16 %v925, %v923
    %v970 = vpack.c.b16 %v926, %v924
    %v971 = vpack.c.b16 %v929, %v927
    %v972 = vpack.c.b16 %v930, %v928
    %v973 = vpack.c.b16 %v933, %v931
    %v974 = vpack.c.b16 %v934, %v932
    %v975 = vpack.c.b16 %v937, %v935
    %v976 = vpack.c.b16 %v938, %v936
    %v977 = vpack.c.b16 %v941, %v939
    %v978 = vpack.c.b16 %v942, %v940
    %v979 = vpack.c.b16 %v945, %v943
    %v980 = vpack.c.b16 %v946, %v944
    %v981 = vpack.c.b16 %v949, %v947
    %v982 = vpack.c.b16 %v950, %v948
    %1015 = vmatprep.subr.bf16.mxu0 %v952
    %1016 = vmatpush1.bf16.msra.mxu0 %v951
    %1017 = vmatprep.subr.bf16.mxu0 %v954
    %1018 = vmatpush1.bf16.msra.mxu0 %v953
    %1019 = vmatprep.subr.bf16.mxu0 %v956
    %1020 = vmatpush1.bf16.msra.mxu0 %v955
    %1021 = vmatprep.subr.bf16.mxu0 %v958
    %1022 = vmatpush1.bf16.msra.mxu0 %v957
    %1023 = vmatprep.subr.bf16.mxu0 %v960
    %1024 = vmatpush1.bf16.msra.mxu0 %v959
    %1025 = vmatprep.subr.bf16.mxu0 %v962
    %1026 = vmatpush1.bf16.msra.mxu0 %v961
    %1027 = vmatprep.subr.bf16.mxu0 %v964
    %1028 = vmatpush1.bf16.msra.mxu0 %v963
    %1029 = vmatprep.subr.bf16.mxu0 %v966
    %1030 = vmatpush1.bf16.msra.mxu0 %v965
    %1031 = vmatprep.subr.bf16.mxu0 %v968
    %1032 = vmatpush1.bf16.msra.mxu0 %v967
    %1033 = vmatprep.subr.bf16.mxu0 %v970
    %1034 = vmatpush1.bf16.msra.mxu0 %v969
    %1035 = vmatprep.subr.bf16.mxu0 %v972
    %1036 = vmatpush1.bf16.msra.mxu0 %v971
    %1037 = vmatprep.subr.bf16.mxu0 %v974
    %1038 = vmatpush1.bf16.msra.mxu0 %v973
    %1039 = vmatprep.subr.bf16.mxu0 %v976
    %1040 = vmatpush1.bf16.msra.mxu0 %v975
    %1041 = vmatprep.subr.bf16.mxu0 %v978
    %1042 = vmatpush1.bf16.msra.mxu0 %v977
    %1043 = vmatprep.subr.bf16.mxu0 %v980
    %1044 = vmatpush1.bf16.msra.mxu0 %v979
    %1045 = vmatprep.subr.bf16.mxu0 %v982
    %1046 = vmatpush1.bf16.msra.mxu0 %v981
    %1047 = vmatprep.mubr.bf16.mxu0 %v841
    %1048 = vmatmul.mubr.bf16.gmra.mrb[0].mxu0 %v840
    %v1049 = vpop.f32.mrb[0].mxu0
    %v1050 = vadd.f32 %v848, %v1049
    %v1051 = vpop.f32.mrb[0].mxu0
    %v1052 = vadd.f32 %v852, %v1051
    %v1053 = vpop.f32.mrb[0].mxu0
    %v1054 = vpop.f32.mrb[0].mxu0
    %1055 = vdwg.mxu0
    %v1056 = vmax.f32 %v1050, 0.0
    %v1057 = vmax.f32 %v1052, 0.0
    %s1058 = scalar_lea.vmem [#allocation2], 1024
    %v1059 = vld [vmem:[%s1058] sm:$0xff]
    %v1060 = vld [vmem:[%s1058 + $0x8] sm:$0xff]
    %v1061 = vld [vmem:[%s1058 + $0x10] sm:$0xff]
    %v1062 = vld [vmem:[%s1058 + $0x18] sm:$0xff]
    %v1063 = vld [vmem:[%s1058 + $0x20] sm:$0xff]
    %v1064 = vld [vmem:[%s1058 + $0x28] sm:$0xff]
    %v1065 = vld [vmem:[%s1058 + $0x30] sm:$0xff]
    %v1066 = vld [vmem:[%s1058 + $0x38] sm:$0xff]
    %v1067 = vld [vmem:[%s1058 + $0x40] sm:$0xff]
    %v1068 = vld [vmem:[%s1058 + $0x48] sm:$0xff]
    %v1069 = vld [vmem:[%s1058 + $0x50] sm:$0xff]
    %v1070 = vld [vmem:[%s1058 + $0x58] sm:$0xff]
    %v1071 = vld [vmem:[%s1058 + $0x60] sm:$0xff]
    %v1072 = vld [vmem:[%s1058 + $0x68] sm:$0xff]
    %v1073 = vld [vmem:[%s1058 + $0x70] sm:$0xff]
    %v1074 = vld [vmem:[%s1058 + $0x78] sm:$0xff]
    %v1075 = vld [vmem:[%s1058 + $0x80] sm:$0xff]
    %v1076 = vld [vmem:[%s1058 + $0x88] sm:$0xff]
    %v1077 = vld [vmem:[%s1058 + $0x90] sm:$0xff]
    %v1078 = vld [vmem:[%s1058 + $0x98] sm:$0xff]
    %v1079 = vld [vmem:[%s1058 + $0xa0] sm:$0xff]
    %v1080 = vld [vmem:[%s1058 + $0xa8] sm:$0xff]
    %v1081 = vld [vmem:[%s1058 + $0xb0] sm:$0xff]
    %v1082 = vld [vmem:[%s1058 + $0xb8] sm:$0xff]
    %v1083 = vld [vmem:[%s1058 + $0xc0] sm:$0xff]
    %v1084 = vld [vmem:[%s1058 + $0xc8] sm:$0xff]
    %v1085 = vld [vmem:[%s1058 + $0xd0] sm:$0xff]
    %v1086 = vld [vmem:[%s1058 + $0xd8] sm:$0xff]
    %v1087 = vld [vmem:[%s1058 + $0xe0] sm:$0xff]
    %v1088 = vld [vmem:[%s1058 + $0xe8] sm:$0xff]
    %v1089 = vld [vmem:[%s1058 + $0xf0] sm:$0xff]
    %v1090 = vld [vmem:[%s1058 + $0xf8] sm:$0xff]
    %v1091 = vpack.c.bf16 %v1056, %v1056
    %v1092 = vpack.c.bf16 %v1057, %v1057
    %s1093 = scalar_lea.vmem %s3, 4
    %v1094 = vld [vmem:[%s1093] ss:$8 sm:$0x3]
    %v1096 = vlaneseq
    %v1097 = vshrl.u32 %v1096, 7
    %v1098 = vsub.s32 0, %v1097
    %v1099 = vrot.slane %v1094, %v1098
    %v1100 = vlaneseq
    %v1101 = vshrl.u32 %v1100, 7
    %v1102 = vsub.s32 1, %v1101
    %v1103 = vrot.slane %v1094, %v1102
    %v1138 = vunpack.c.l.b16 %v1059
    %v1139 = vunpack.c.h.b16 %v1059
    %v1140 = vunpack.c.l.b16 %v1060
    %v1141 = vunpack.c.h.b16 %v1060
    %v1142 = vunpack.c.l.b16 %v1061
    %v1143 = vunpack.c.h.b16 %v1061
    %v1144 = vunpack.c.l.b16 %v1062
    %v1145 = vunpack.c.h.b16 %v1062
    %v1146 = vunpack.c.l.b16 %v1063
    %v1147 = vunpack.c.h.b16 %v1063
    %v1148 = vunpack.c.l.b16 %v1064
    %v1149 = vunpack.c.h.b16 %v1064
    %v1150 = vunpack.c.l.b16 %v1065
    %v1151 = vunpack.c.h.b16 %v1065
    %v1152 = vunpack.c.l.b16 %v1066
    %v1153 = vunpack.c.h.b16 %v1066
    %v1154 = vunpack.c.l.b16 %v1067
    %v1155 = vunpack.c.h.b16 %v1067
    %v1156 = vunpack.c.l.b16 %v1068
    %v1157 = vunpack.c.h.b16 %v1068
    %v1158 = vunpack.c.l.b16 %v1069
    %v1159 = vunpack.c.h.b16 %v1069
    %v1160 = vunpack.c.l.b16 %v1070
    %v1161 = vunpack.c.h.b16 %v1070
    %v1162 = vunpack.c.l.b16 %v1071
    %v1163 = vunpack.c.h.b16 %v1071
    %v1164 = vunpack.c.l.b16 %v1072
    %v1165 = vunpack.c.h.b16 %v1072
    %v1166 = vunpack.c.l.b16 %v1073
    %v1167 = vunpack.c.h.b16 %v1073
    %v1168 = vunpack.c.l.b16 %v1074
    %v1169 = vunpack.c.h.b16 %v1074
    %v1170 = vunpack.c.l.b16 %v1075
    %v1171 = vunpack.c.h.b16 %v1075
    %v1172 = vunpack.c.l.b16 %v1076
    %v1173 = vunpack.c.h.b16 %v1076
    %v1174 = vunpack.c.l.b16 %v1077
    %v1175 = vunpack.c.h.b16 %v1077
    %v1176 = vunpack.c.l.b16 %v1078
    %v1177 = vunpack.c.h.b16 %v1078
    %v1178 = vunpack.c.l.b16 %v1079
    %v1179 = vunpack.c.h.b16 %v1079
    %v1180 = vunpack.c.l.b16 %v1080
    %v1181 = vunpack.c.h.b16 %v1080
    %v1182 = vunpack.c.l.b16 %v1081
    %v1183 = vunpack.c.h.b16 %v1081
    %v1184 = vunpack.c.l.b16 %v1082
    %v1185 = vunpack.c.h.b16 %v1082
    %v1186 = vunpack.c.l.b16 %v1083
    %v1187 = vunpack.c.h.b16 %v1083
    %v1188 = vunpack.c.l.b16 %v1084
    %v1189 = vunpack.c.h.b16 %v1084
    %v1190 = vunpack.c.l.b16 %v1085
    %v1191 = vunpack.c.h.b16 %v1085
    %v1192 = vunpack.c.l.b16 %v1086
    %v1193 = vunpack.c.h.b16 %v1086
    %v1194 = vunpack.c.l.b16 %v1087
    %v1195 = vunpack.c.h.b16 %v1087
    %v1196 = vunpack.c.l.b16 %v1088
    %v1197 = vunpack.c.h.b16 %v1088
    %v1198 = vunpack.c.l.b16 %v1089
    %v1199 = vunpack.c.h.b16 %v1089
    %v1200 = vunpack.c.l.b16 %v1090
    %v1201 = vunpack.c.h.b16 %v1090
    %v1202 = vpack.c.b16 %v1140, %v1138
    %v1203 = vpack.c.b16 %v1141, %v1139
    %v1204 = vpack.c.b16 %v1144, %v1142
    %v1205 = vpack.c.b16 %v1145, %v1143
    %v1206 = vpack.c.b16 %v1148, %v1146
    %v1207 = vpack.c.b16 %v1149, %v1147
    %v1208 = vpack.c.b16 %v1152, %v1150
    %v1209 = vpack.c.b16 %v1153, %v1151
    %v1210 = vpack.c.b16 %v1156, %v1154
    %v1211 = vpack.c.b16 %v1157, %v1155
    %v1212 = vpack.c.b16 %v1160, %v1158
    %v1213 = vpack.c.b16 %v1161, %v1159
    %v1214 = vpack.c.b16 %v1164, %v1162
    %v1215 = vpack.c.b16 %v1165, %v1163
    %v1216 = vpack.c.b16 %v1168, %v1166
    %v1217 = vpack.c.b16 %v1169, %v1167
    %v1218 = vpack.c.b16 %v1172, %v1170
    %v1219 = vpack.c.b16 %v1173, %v1171
    %v1220 = vpack.c.b16 %v1176, %v1174
    %v1221 = vpack.c.b16 %v1177, %v1175
    %v1222 = vpack.c.b16 %v1180, %v1178
    %v1223 = vpack.c.b16 %v1181, %v1179
    %v1224 = vpack.c.b16 %v1184, %v1182
    %v1225 = vpack.c.b16 %v1185, %v1183
    %v1226 = vpack.c.b16 %v1188, %v1186
    %v1227 = vpack.c.b16 %v1189, %v1187
    %v1228 = vpack.c.b16 %v1192, %v1190
    %v1229 = vpack.c.b16 %v1193, %v1191
    %v1230 = vpack.c.b16 %v1196, %v1194
    %v1231 = vpack.c.b16 %v1197, %v1195
    %v1232 = vpack.c.b16 %v1200, %v1198
    %v1233 = vpack.c.b16 %v1201, %v1199
    %1266 = vmatprep.subr.bf16.mxu0 %v1203
    %1267 = vmatpush1.bf16.msra.mxu0 %v1202
    %1268 = vmatprep.subr.bf16.mxu0 %v1205
    %1269 = vmatpush1.bf16.msra.mxu0 %v1204
    %1270 = vmatprep.subr.bf16.mxu0 %v1207
    %1271 = vmatpush1.bf16.msra.mxu0 %v1206
    %1272 = vmatprep.subr.bf16.mxu0 %v1209
    %1273 = vmatpush1.bf16.msra.mxu0 %v1208
    %1274 = vmatprep.subr.bf16.mxu0 %v1211
    %1275 = vmatpush1.bf16.msra.mxu0 %v1210
    %1276 = vmatprep.subr.bf16.mxu0 %v1213
    %1277 = vmatpush1.bf16.msra.mxu0 %v1212
    %1278 = vmatprep.subr.bf16.mxu0 %v1215
    %1279 = vmatpush1.bf16.msra.mxu0 %v1214
    %1280 = vmatprep.subr.bf16.mxu0 %v1217
    %1281 = vmatpush1.bf16.msra.mxu0 %v1216
    %1282 = vmatprep.subr.bf16.mxu0 %v1219
    %1283 = vmatpush1.bf16.msra.mxu0 %v1218
    %1284 = vmatprep.subr.bf16.mxu0 %v1221
    %1285 = vmatpush1.bf16.msra.mxu0 %v1220
    %1286 = vmatprep.subr.bf16.mxu0 %v1223
    %1287 = vmatpush1.bf16.msra.mxu0 %v1222
    %1288 = vmatprep.subr.bf16.mxu0 %v1225
    %1289 = vmatpush1.bf16.msra.mxu0 %v1224
    %1290 = vmatprep.subr.bf16.mxu0 %v1227
    %1291 = vmatpush1.bf16.msra.mxu0 %v1226
    %1292 = vmatprep.subr.bf16.mxu0 %v1229
    %1293 = vmatpush1.bf16.msra.mxu0 %v1228
    %1294 = vmatprep.subr.bf16.mxu0 %v1231
    %1295 = vmatpush1.bf16.msra.mxu0 %v1230
    %1296 = vmatprep.subr.bf16.mxu0 %v1233
    %1297 = vmatpush1.bf16.msra.mxu0 %v1232
    %1298 = vmatprep.mubr.bf16.mxu0 %v1092
    %1299 = vmatmul.mubr.bf16.gmra.mrb[0].mxu0 %v1091
    %v1300 = vpop.f32.mrb[0].mxu0
    %v1301 = vadd.f32 %v1099, %v1300
    %v1302 = vpop.f32.mrb[0].mxu0
    %v1303 = vadd.f32 %v1103, %v1302
    %v1304 = vpop.f32.mrb[0].mxu0
    %v1305 = vpop.f32.mrb[0].mxu0
    %1306 = vdwg.mxu0
    %1308 = vrot.lane.b32.xlu0 %v805, 32
    %v1309 = vpop.permute.xlu0 %1308
    %v1311 = vsel %vm129, %v1301, %v1309
    %1312 = vst.msk [vmem:[#allocation5] sm:$0xff] %vm137, %v1311
    %1314 = vrot.lane.b32.xlu0 %v1301, 96
    %v1315 = vpop.permute.xlu0 %1314
    %v1317 = vsel %vm129, %v1315, %v805
    %s1318 = scalar_lea.vmem [#allocation5], 8
    %1319 = vst.msk [vmem:[%s1318] sm:$0xff] %vm137, %v1317
    %1320 = vrot.lane.b32.xlu0 %v1301, 64
    %v1321 = vpop.permute.xlu0 %1320
    %1323 = vrot.lane.b32.xlu0 %v805, 96
    %v1324 = vpop.permute.xlu0 %1323
    %v1326 = vsel %vm129, %v1321, %v1324
    %s1327 = scalar_lea.vmem [#allocation5], 16
    %1328 = vst.msk [vmem:[%s1327] sm:$0xff] %vm137, %v1326
    %1329 = vrot.lane.b32.xlu0 %v1301, 32
    %v1330 = vpop.permute.xlu0 %1329
    %1332 = vrot.lane.b32.xlu0 %v805, 64
    %v1333 = vpop.permute.xlu0 %1332
    %v1335 = vsel %vm129, %v1330, %v1333
    %s1336 = scalar_lea.vmem [#allocation5], 24
    %1337 = vst.msk [vmem:[%s1336] sm:$0xff] %vm137, %v1335
    %1339 = vrot.lane.b32.xlu0 %v806, 32
    %v1340 = vpop.permute.xlu0 %1339
    %v1342 = vsel %vm129, %v1303, %v1340
    %s1343 = scalar_lea.vmem [#allocation5], 32
    %1344 = vst.msk [vmem:[%s1343] sm:$0xff] %vm137, %v1342
    %1346 = vrot.lane.b32.xlu0 %v1303, 96
    %v1347 = vpop.permute.xlu0 %1346
    %v1349 = vsel %vm129, %v1347, %v806
    %s1350 = scalar_lea.vmem [#allocation5], 40
    %1351 = vst.msk [vmem:[%s1350] sm:$0xff] %vm137, %v1349
    %1352 = vrot.lane.b32.xlu0 %v1303, 64
    %v1353 = vpop.permute.xlu0 %1352
    %1355 = vrot.lane.b32.xlu0 %v806, 96
    %v1356 = vpop.permute.xlu0 %1355
    %v1358 = vsel %vm129, %v1353, %v1356
    %s1359 = scalar_lea.vmem [#allocation5], 48
    %1360 = vst.msk [vmem:[%s1359] sm:$0xff] %vm137, %v1358
    %1361 = vrot.lane.b32.xlu0 %v1303, 32
    %v1362 = vpop.permute.xlu0 %1361
    %1364 = vrot.lane.b32.xlu0 %v806, 64
    %v1365 = vpop.permute.xlu0 %1364
    %v1367 = vsel %vm129, %v1362, %v1365
    %s1368 = scalar_lea.vmem [#allocation5], 56
    %1369 = vst.msk [vmem:[%s1368] sm:$0xff] %vm137, %v1367
    // Predicated region
    $region22: #{tpu_custom_call.1} parent=1 // pred_check
      _
    $region23: #{tpu_custom_call.1} parent=1 // pred_check_branch
      %1371 = sbr.rel (0) target = $region25
    $region24: #{tpu_custom_call.1} parent=1 // pred_region
      %s1373 = ssub.s32 1024, 1024
      %1374 = vsyncadd [#allocation4], %s1373
      %s1375 = sshll.u32 [#allocation5], 4
      %s1376 = int_to_ptr.vmem [resolvable:$true] %s1375
      %1381 = dma.vmem_to_hbm [thread:$0]  %s1376, 1024, %s4, [#allocation4], 128, 128, 8
    $region25: #{tpu_custom_call.1} parent=1 // pred_fallthru
      _
    // Predicated region
    $region26: #{tpu_custom_call.1} parent=1 // pred_check
      _
    $region27: #{tpu_custom_call.1} parent=1 // pred_check_branch
      %1383 = sbr.rel (0) target = $region29
    $region28: #{tpu_custom_call.1} parent=1 // pred_region
      %1384 = dma.done [#allocation4], 1024
    $region29: #{tpu_custom_call.1} parent=1 // pred_fallthru
      _
    %1385 = vsyncpa [#allocation3], 1
    %1386 = vsyncpa [#allocation4], 1

</llo_original>
